<compile_context>
chip_gen: v7x
topology: tpu7x:2x2x1
jax: 0.10.0
libtpu: 0.0.40
codegen_flags: <defaults>
</compile_context>

<pallas_src>
import jax
import jax.numpy as jnp
from jax.experimental import pallas as pl
from jax.experimental.pallas import tpu as pltpu

EPS = 1e-5


# --------------------------------------------------------------------------
# Fused kernel: LN -> ReLU -> conv3 -> LN -> ReLU -> conv3 -> AvgPool(2)
# Activations live as (C, B*D) f32: C on sublanes, B*D on lanes (lane-dense).
# --------------------------------------------------------------------------
def enc_res_block_kernel(x_ref, ln1w_ref, ln1b_ref, w1_ref, b1_ref,
                         ln2w_ref, ln2b_ref, w2_ref, b2_ref,
                         notl_ref, notr_ref, sum_ref, bcast_ref, pool_ref,
                         o_ref):
    x = x_ref[...]                 # (Cin, B*D) f32
    notl = notl_ref[...]           # (1, B*D) f32, 0 at each sample's left edge
    notr = notr_ref[...]           # (1, B*D) f32, 0 at each sample's right edge
    sum_m = sum_ref[...]           # (B*D, Bp) per-sample sum matrix, 1/(Cin*D) folded in
    bcast = bcast_ref[...]         # (Bp, B*D) per-sample broadcast back to lanes
    bd = x.shape[1]

    def per_sample_mean(row):
        # (1, BD) column sums -> per-sample scalar -> broadcast to that sample's lanes.
        per = jnp.dot(row, sum_m, preferred_element_type=jnp.float32)    # (1, Bp)
        return jnp.dot(per, bcast, preferred_element_type=jnp.float32)   # (1, BD)

    def layer_norm_relu(h, w, b):
        # Per-sample LayerNorm over (C, D): sublane-sum (XLU) + factored mean matmuls.
        mean = per_sample_mean(jnp.sum(h, axis=0, keepdims=True))
        d = h - mean
        var = per_sample_mean(jnp.sum(d * d, axis=0, keepdims=True))
        y = d * jax.lax.rsqrt(var + EPS) * w + b                         # affine (pre-tiled)
        return jnp.maximum(y, 0.0)

    def conv3_same(h, w_ref3, bcol):
        # k=3 'same' conv: taps via XLU roll + edge masks, channel mixing as three
        # (Co, Ci) x (Ci, BD) MXU matmuls accumulated in f32.
        h_m1 = pltpu.roll(h, 1, axis=1) * notl        # h[:, t-1], zero-padded per sample
        h_p1 = pltpu.roll(h, bd - 1, axis=1) * notr   # h[:, t+1], zero-padded per sample
        y = jnp.dot(w_ref3[0], h_m1, preferred_element_type=jnp.float32)
        y = y + jnp.dot(w_ref3[1], h, preferred_element_type=jnp.float32)
        y = y + jnp.dot(w_ref3[2], h_p1, preferred_element_type=jnp.float32)
        return y + bcol

    h = layer_norm_relu(x, ln1w_ref[...], ln1b_ref[...])     # (Cin, BD)
    h = conv3_same(h, w1_ref, b1_ref[...])                    # (Cin, BD)
    h = layer_norm_relu(h, ln2w_ref[...], ln2b_ref[...])      # (Cin, BD)
    h = conv3_same(h, w2_ref, b2_ref[...])                    # (Cout, BD)

    # AvgPool1d(2): one matmul with a constant 0.5-valued pooling matrix (BD, BD/2).
    o_ref[...] = jnp.dot(h, pool_ref[...],
                         preferred_element_type=jnp.float32).astype(o_ref.dtype)


def _vmem():
    # whole-array-in-VMEM spec (no tiling needed at these tiny shapes)
    return pl.BlockSpec(memory_space=pltpu.MemorySpace.VMEM)


# --------------------------------------------------------------------------
# Wrapper: EncResBlock1d forward.  x: (B, Cin, D) -> (B, Cout, D // 2)
# --------------------------------------------------------------------------
def enc_res_block_1d(x, params):
    ln1w, ln1b, w1, b1, ln2w, ln2b, w2, b2 = params
    B, Cin, D = x.shape
    Cout = w2.shape[0]
    assert D % 2 == 0, "AvgPool1d(2) with even dim"
    BD = B * D
    Dh = D // 2
    Bp = ((B + 7) // 8) * 8          # per-sample axis padded to a sublane multiple
    f32 = jnp.float32

    # ---- layout plumbing (wrapper side, cheap): lane-dense (C, B*D) activations ----
    x2 = jnp.transpose(x, (1, 0, 2)).reshape(Cin, BD).astype(f32)

    # Conv weights (O, I, K) -> tap-major (K, O, I); biases as columns.
    w1s = jnp.transpose(w1, (2, 0, 1)).astype(f32)      # (3, Cin, Cin)
    w2s = jnp.transpose(w2, (2, 0, 1)).astype(f32)      # (3, Cout, Cin)
    b1c = b1.reshape(Cin, 1).astype(f32)
    b2c = b2.reshape(Cout, 1).astype(f32)

    # LayerNorm affine params tiled across batch segments: (Cin, D) -> (Cin, B*D).
    lw1 = jnp.tile(ln1w.astype(f32), (1, B))
    lb1 = jnp.tile(ln1b.astype(f32), (1, B))
    lw2 = jnp.tile(ln2w.astype(f32), (1, B))
    lb2 = jnp.tile(ln2b.astype(f32), (1, B))

    # ---- static helper constants (lane bookkeeping done once, outside the kernel) ----
    lane = jnp.arange(BD)
    pos = lane % D
    seg = lane // D
    notl = (pos != 0).astype(f32)[None, :]
    notr = (pos != D - 1).astype(f32)[None, :]
    samp = jnp.arange(Bp)[None, :]
    # factored per-sample mean: sum over a sample's lanes (with 1/(Cin*D)) then broadcast
    sum_m = (seg[:, None] == samp).astype(f32) / float(Cin * D)          # (BD, Bp)
    bcast = (samp.T == seg[None, :]).astype(f32)                         # (Bp, BD)
    # AvgPool1d(2) matrix: 0.5 where input lane l feeds output lane l // 2
    pool = ((lane[:, None] // 2) == jnp.arange(B * Dh)[None, :]).astype(f32) * 0.5

    out2d = pl.pallas_call(
        enc_res_block_kernel,
        out_shape=jax.ShapeDtypeStruct((Cout, B * Dh), f32),
        in_specs=[_vmem()] * 14,
        out_specs=_vmem(),
    )(x2, lw1, lb1, w1s, b1c, lw2, lb2, w2s, b2c, notl, notr, sum_m, bcast, pool)

    # lane-dense (Cout, B*Dh) slab -> module layout (B, Cout, Dh)
    return jnp.transpose(out2d.reshape(Cout, B, Dh), (1, 0, 2))


# --------------------------------------------------------------------------
# Pure-JAX reference, literal transcription of the PyTorch module
# --------------------------------------------------------------------------
def reference(x, params):
    ln1w, ln1b, w1, b1, ln2w, ln2b, w2, b2 = params

    def layer_norm_relu(h, w, b):
        mean = h.mean(axis=(1, 2), keepdims=True)
        var = ((h - mean) ** 2).mean(axis=(1, 2), keepdims=True)
        y = (h - mean) / jnp.sqrt(var + EPS) * w[None] + b[None]
        return jnp.maximum(y, 0.0)

    def conv_same(h, w, b):
        y = jax.lax.conv_general_dilated(
            h, w, window_strides=(1,), padding=[(1, 1)],
            dimension_numbers=('NCH', 'OIH', 'NCH'))
        return y + b[None, :, None]

    h = conv_same(layer_norm_relu(x, ln1w, ln1b), w1, b1)
    h = conv_same(layer_norm_relu(h, ln2w, ln2b), w2, b2)
    Bx, Cx, Lx = h.shape
    return h.reshape(Bx, Cx, Lx // 2, 2).mean(axis=-1)     # AvgPool1d(2)


if __name__ == "__main__":
    B, Cin, Cout, D = 2, 4, 8, 16

    key = jax.random.PRNGKey(0)
    ks = jax.random.split(key, 9)
    x = jax.random.normal(ks[0], (B, Cin, D), dtype=jnp.float32)

    # Deterministic synthetic parameters (PyTorch-layout shapes).
    ln1w = 1.0 + 0.1 * jax.random.normal(ks[1], (Cin, D), dtype=jnp.float32)
    ln1b = 0.1 * jax.random.normal(ks[2], (Cin, D), dtype=jnp.float32)
    w1 = 0.2 * jax.random.normal(ks[3], (Cin, Cin, 3), dtype=jnp.float32)   # Conv1d k=3
    b1 = 0.1 * jax.random.normal(ks[4], (Cin,), dtype=jnp.float32)
    ln2w = 1.0 + 0.1 * jax.random.normal(ks[5], (Cin, D), dtype=jnp.float32)
    ln2b = 0.1 * jax.random.normal(ks[6], (Cin, D), dtype=jnp.float32)
    w2 = 0.2 * jax.random.normal(ks[7], (Cout, Cin, 3), dtype=jnp.float32)  # Conv1d k=3
    b2 = 0.1 * jax.random.normal(ks[8], (Cout,), dtype=jnp.float32)
    params = (ln1w, ln1b, w1, b1, ln2w, ln2b, w2, b2)

    out = jax.block_until_ready(jax.jit(enc_res_block_1d)(x, params))
    ref = jax.block_until_ready(reference(x, params))

    assert out.shape == (B, Cout, D // 2), out.shape
    # tolerance accounts for TPU MXU default f32 matmul precision
    if not jnp.allclose(out, ref, atol=1e-3, rtol=1e-3):
        err = float(jnp.max(jnp.abs(out - ref)))
        raise AssertionError(f"Pallas output does not match reference (max abs err {err})")
    print("KERNEL_OK")
</pallas_src>

<mosaic_0001>
module attributes {stable_mosaic.version = 11 : i64} {
  func.func @enc_res_block_kernel(%arg0: memref<4x32xf32, #tpu.memory_space<vmem>>, %arg1: memref<4x32xf32, #tpu.memory_space<vmem>>, %arg2: memref<4x32xf32, #tpu.memory_space<vmem>>, %arg3: memref<3x4x4xf32, #tpu.memory_space<vmem>>, %arg4: memref<4x1xf32, #tpu.memory_space<vmem>>, %arg5: memref<4x32xf32, #tpu.memory_space<vmem>>, %arg6: memref<4x32xf32, #tpu.memory_space<vmem>>, %arg7: memref<3x8x4xf32, #tpu.memory_space<vmem>>, %arg8: memref<8x1xf32, #tpu.memory_space<vmem>>, %arg9: memref<1x32xf32, #tpu.memory_space<vmem>>, %arg10: memref<1x32xf32, #tpu.memory_space<vmem>>, %arg11: memref<32x8xf32, #tpu.memory_space<vmem>>, %arg12: memref<8x32xf32, #tpu.memory_space<vmem>>, %arg13: memref<32x16xf32, #tpu.memory_space<vmem>>, %arg14: memref<8x16xf32, #tpu.memory_space<vmem>>) attributes {dimension_semantics = [], scalar_prefetch = 0 : i64, scratch_operands = 0 : i64, tpu.core_type = #tpu.core_type<tc>} {
    %c0 = arith.constant 0 : index
    %c0_0 = arith.constant 0 : index
    %0 = vector.load %arg0[%c0, %c0_0] : memref<4x32xf32, #tpu.memory_space<vmem>>, vector<4x32xf32>
    %c0_1 = arith.constant 0 : index
    %c0_2 = arith.constant 0 : index
    %1 = vector.load %arg9[%c0_1, %c0_2] : memref<1x32xf32, #tpu.memory_space<vmem>>, vector<1x32xf32>
    %c0_3 = arith.constant 0 : index
    %c0_4 = arith.constant 0 : index
    %2 = vector.load %arg10[%c0_3, %c0_4] : memref<1x32xf32, #tpu.memory_space<vmem>>, vector<1x32xf32>
    %c0_5 = arith.constant 0 : index
    %c0_6 = arith.constant 0 : index
    %3 = vector.load %arg11[%c0_5, %c0_6] : memref<32x8xf32, #tpu.memory_space<vmem>>, vector<32x8xf32>
    %c0_7 = arith.constant 0 : index
    %c0_8 = arith.constant 0 : index
    %4 = vector.load %arg12[%c0_7, %c0_8] : memref<8x32xf32, #tpu.memory_space<vmem>>, vector<8x32xf32>
    %c0_9 = arith.constant 0 : index
    %c0_10 = arith.constant 0 : index
    %5 = vector.load %arg1[%c0_9, %c0_10] : memref<4x32xf32, #tpu.memory_space<vmem>>, vector<4x32xf32>
    %c0_11 = arith.constant 0 : index
    %c0_12 = arith.constant 0 : index
    %6 = vector.load %arg2[%c0_11, %c0_12] : memref<4x32xf32, #tpu.memory_space<vmem>>, vector<4x32xf32>
    %cst = arith.constant dense<0.000000e+00> : vector<32xf32>
    %7 = vector.multi_reduction <add>, %0, %cst [0] : vector<4x32xf32> to vector<32xf32>
    %8 = vector.shape_cast %7 : vector<32xf32> to vector<1x32xf32>
    %cst_13 = arith.constant dense<0.000000e+00> : vector<1x8xf32>
    %9 = tpu.matmul %8, %3, %cst_13 {dimension_numbers = #tpu.dot_dimension_numbers<[1], [0], [0], [1], [0, 0, 1, 1], [], []>} : vector<1x32xf32>, vector<32x8xf32>, vector<1x8xf32> -> vector<1x8xf32>
    %cst_14 = arith.constant dense<0.000000e+00> : vector<1x32xf32>
    %10 = tpu.matmul %9, %4, %cst_14 {dimension_numbers = #tpu.dot_dimension_numbers<[1], [0], [0], [1], [0, 0, 1, 1], [], []>} : vector<1x8xf32>, vector<8x32xf32>, vector<1x32xf32> -> vector<1x32xf32>
    %11 = vector.broadcast %10 : vector<1x32xf32> to vector<4x32xf32>
    %12 = arith.subf %0, %11 : vector<4x32xf32>
    %13 = arith.mulf %12, %12 : vector<4x32xf32>
    %cst_15 = arith.constant dense<0.000000e+00> : vector<32xf32>
    %14 = vector.multi_reduction <add>, %13, %cst_15 [0] : vector<4x32xf32> to vector<32xf32>
    %15 = vector.shape_cast %14 : vector<32xf32> to vector<1x32xf32>
    %cst_16 = arith.constant dense<0.000000e+00> : vector<1x8xf32>
    %16 = tpu.matmul %15, %3, %cst_16 {dimension_numbers = #tpu.dot_dimension_numbers<[1], [0], [0], [1], [0, 0, 1, 1], [], []>} : vector<1x32xf32>, vector<32x8xf32>, vector<1x8xf32> -> vector<1x8xf32>
    %cst_17 = arith.constant dense<0.000000e+00> : vector<1x32xf32>
    %17 = tpu.matmul %16, %4, %cst_17 {dimension_numbers = #tpu.dot_dimension_numbers<[1], [0], [0], [1], [0, 0, 1, 1], [], []>} : vector<1x8xf32>, vector<8x32xf32>, vector<1x32xf32> -> vector<1x32xf32>
    %cst_18 = arith.constant 9.99999974E-6 : f32
    %18 = vector.broadcast %cst_18 : f32 to vector<1x32xf32>
    %19 = arith.addf %17, %18 : vector<1x32xf32>
    %20 = math.rsqrt %19 : vector<1x32xf32>
    %21 = vector.broadcast %20 : vector<1x32xf32> to vector<4x32xf32>
    %22 = arith.mulf %12, %21 : vector<4x32xf32>
    %23 = arith.mulf %22, %5 : vector<4x32xf32>
    %24 = arith.addf %23, %6 : vector<4x32xf32>
    %cst_19 = arith.constant 0.000000e+00 : f32
    %25 = vector.broadcast %cst_19 : f32 to vector<4x32xf32>
    %26 = arith.maximumf %24, %25 : vector<4x32xf32>
    %c0_20 = arith.constant 0 : index
    %c0_21 = arith.constant 0 : index
    %27 = vector.load %arg4[%c0_20, %c0_21] : memref<4x1xf32, #tpu.memory_space<vmem>>, vector<4x1xf32>
    %c1_i32 = arith.constant 1 : i32
    %28 = tpu.dynamic_rotate %26 by %c1_i32 dim 1 : vector<4x32xf32>, i32 -> vector<4x32xf32>
    %29 = vector.broadcast %1 : vector<1x32xf32> to vector<4x32xf32>
    %30 = arith.mulf %28, %29 : vector<4x32xf32>
    %c31_i32 = arith.constant 31 : i32
    %31 = tpu.dynamic_rotate %26 by %c31_i32 dim 1 : vector<4x32xf32>, i32 -> vector<4x32xf32>
    %32 = vector.broadcast %2 : vector<1x32xf32> to vector<4x32xf32>
    %33 = arith.mulf %31, %32 : vector<4x32xf32>
    %c0_22 = arith.constant 0 : index
    %c0_23 = arith.constant 0 : index
    %c0_24 = arith.constant 0 : index
    %34 = vector.load %arg3[%c0_22, %c0_23, %c0_24] : memref<3x4x4xf32, #tpu.memory_space<vmem>>, vector<1x4x4xf32>
    %35 = vector.shape_cast %34 : vector<1x4x4xf32> to vector<4x4xf32>
    %cst_25 = arith.constant dense<0.000000e+00> : vector<4x32xf32>
    %36 = tpu.matmul %35, %30, %cst_25 {dimension_numbers = #tpu.dot_dimension_numbers<[1], [0], [0], [1], [0, 0, 1, 1], [], []>} : vector<4x4xf32>, vector<4x32xf32>, vector<4x32xf32> -> vector<4x32xf32>
    %c1 = arith.constant 1 : index
    %c0_26 = arith.constant 0 : index
    %c0_27 = arith.constant 0 : index
    %37 = vector.load %arg3[%c1, %c0_26, %c0_27] : memref<3x4x4xf32, #tpu.memory_space<vmem>>, vector<1x4x4xf32>
    %38 = vector.shape_cast %37 : vector<1x4x4xf32> to vector<4x4xf32>
    %cst_28 = arith.constant dense<0.000000e+00> : vector<4x32xf32>
    %39 = tpu.matmul %38, %26, %cst_28 {dimension_numbers = #tpu.dot_dimension_numbers<[1], [0], [0], [1], [0, 0, 1, 1], [], []>} : vector<4x4xf32>, vector<4x32xf32>, vector<4x32xf32> -> vector<4x32xf32>
    %40 = arith.addf %36, %39 : vector<4x32xf32>
    %c2 = arith.constant 2 : index
    %c0_29 = arith.constant 0 : index
    %c0_30 = arith.constant 0 : index
    %41 = vector.load %arg3[%c2, %c0_29, %c0_30] : memref<3x4x4xf32, #tpu.memory_space<vmem>>, vector<1x4x4xf32>
    %42 = vector.shape_cast %41 : vector<1x4x4xf32> to vector<4x4xf32>
    %cst_31 = arith.constant dense<0.000000e+00> : vector<4x32xf32>
    %43 = tpu.matmul %42, %33, %cst_31 {dimension_numbers = #tpu.dot_dimension_numbers<[1], [0], [0], [1], [0, 0, 1, 1], [], []>} : vector<4x4xf32>, vector<4x32xf32>, vector<4x32xf32> -> vector<4x32xf32>
    %44 = arith.addf %40, %43 : vector<4x32xf32>
    %45 = vector.broadcast %27 : vector<4x1xf32> to vector<4x32xf32>
    %46 = arith.addf %44, %45 : vector<4x32xf32>
    %c0_32 = arith.constant 0 : index
    %c0_33 = arith.constant 0 : index
    %47 = vector.load %arg5[%c0_32, %c0_33] : memref<4x32xf32, #tpu.memory_space<vmem>>, vector<4x32xf32>
    %c0_34 = arith.constant 0 : index
    %c0_35 = arith.constant 0 : index
    %48 = vector.load %arg6[%c0_34, %c0_35] : memref<4x32xf32, #tpu.memory_space<vmem>>, vector<4x32xf32>
    %cst_36 = arith.constant dense<0.000000e+00> : vector<32xf32>
    %49 = vector.multi_reduction <add>, %46, %cst_36 [0] : vector<4x32xf32> to vector<32xf32>
    %50 = vector.shape_cast %49 : vector<32xf32> to vector<1x32xf32>
    %cst_37 = arith.constant dense<0.000000e+00> : vector<1x8xf32>
    %51 = tpu.matmul %50, %3, %cst_37 {dimension_numbers = #tpu.dot_dimension_numbers<[1], [0], [0], [1], [0, 0, 1, 1], [], []>} : vector<1x32xf32>, vector<32x8xf32>, vector<1x8xf32> -> vector<1x8xf32>
    %cst_38 = arith.constant dense<0.000000e+00> : vector<1x32xf32>
    %52 = tpu.matmul %51, %4, %cst_38 {dimension_numbers = #tpu.dot_dimension_numbers<[1], [0], [0], [1], [0, 0, 1, 1], [], []>} : vector<1x8xf32>, vector<8x32xf32>, vector<1x32xf32> -> vector<1x32xf32>
    %53 = vector.broadcast %52 : vector<1x32xf32> to vector<4x32xf32>
    %54 = arith.subf %46, %53 : vector<4x32xf32>
    %55 = arith.mulf %54, %54 : vector<4x32xf32>
    %cst_39 = arith.constant dense<0.000000e+00> : vector<32xf32>
    %56 = vector.multi_reduction <add>, %55, %cst_39 [0] : vector<4x32xf32> to vector<32xf32>
    %57 = vector.shape_cast %56 : vector<32xf32> to vector<1x32xf32>
    %cst_40 = arith.constant dense<0.000000e+00> : vector<1x8xf32>
    %58 = tpu.matmul %57, %3, %cst_40 {dimension_numbers = #tpu.dot_dimension_numbers<[1], [0], [0], [1], [0, 0, 1, 1], [], []>} : vector<1x32xf32>, vector<32x8xf32>, vector<1x8xf32> -> vector<1x8xf32>
    %cst_41 = arith.constant dense<0.000000e+00> : vector<1x32xf32>
    %59 = tpu.matmul %58, %4, %cst_41 {dimension_numbers = #tpu.dot_dimension_numbers<[1], [0], [0], [1], [0, 0, 1, 1], [], []>} : vector<1x8xf32>, vector<8x32xf32>, vector<1x32xf32> -> vector<1x32xf32>
    %cst_42 = arith.constant 9.99999974E-6 : f32
    %60 = vector.broadcast %cst_42 : f32 to vector<1x32xf32>
    %61 = arith.addf %59, %60 : vector<1x32xf32>
    %62 = math.rsqrt %61 : vector<1x32xf32>
    %63 = vector.broadcast %62 : vector<1x32xf32> to vector<4x32xf32>
    %64 = arith.mulf %54, %63 : vector<4x32xf32>
    %65 = arith.mulf %64, %47 : vector<4x32xf32>
    %66 = arith.addf %65, %48 : vector<4x32xf32>
    %cst_43 = arith.constant 0.000000e+00 : f32
    %67 = vector.broadcast %cst_43 : f32 to vector<4x32xf32>
    %68 = arith.maximumf %66, %67 : vector<4x32xf32>
    %c0_44 = arith.constant 0 : index
    %c0_45 = arith.constant 0 : index
    %69 = vector.load %arg8[%c0_44, %c0_45] : memref<8x1xf32, #tpu.memory_space<vmem>>, vector<8x1xf32>
    %c1_i32_46 = arith.constant 1 : i32
    %70 = tpu.dynamic_rotate %68 by %c1_i32_46 dim 1 : vector<4x32xf32>, i32 -> vector<4x32xf32>
    %71 = vector.broadcast %1 : vector<1x32xf32> to vector<4x32xf32>
    %72 = arith.mulf %70, %71 : vector<4x32xf32>
    %c31_i32_47 = arith.constant 31 : i32
    %73 = tpu.dynamic_rotate %68 by %c31_i32_47 dim 1 : vector<4x32xf32>, i32 -> vector<4x32xf32>
    %74 = vector.broadcast %2 : vector<1x32xf32> to vector<4x32xf32>
    %75 = arith.mulf %73, %74 : vector<4x32xf32>
    %c0_48 = arith.constant 0 : index
    %c0_49 = arith.constant 0 : index
    %c0_50 = arith.constant 0 : index
    %76 = vector.load %arg7[%c0_48, %c0_49, %c0_50] : memref<3x8x4xf32, #tpu.memory_space<vmem>>, vector<1x8x4xf32>
    %77 = vector.shape_cast %76 : vector<1x8x4xf32> to vector<8x4xf32>
    %cst_51 = arith.constant dense<0.000000e+00> : vector<8x32xf32>
    %78 = tpu.matmul %77, %72, %cst_51 {dimension_numbers = #tpu.dot_dimension_numbers<[1], [0], [0], [1], [0, 0, 1, 1], [], []>} : vector<8x4xf32>, vector<4x32xf32>, vector<8x32xf32> -> vector<8x32xf32>
    %c1_52 = arith.constant 1 : index
    %c0_53 = arith.constant 0 : index
    %c0_54 = arith.constant 0 : index
    %79 = vector.load %arg7[%c1_52, %c0_53, %c0_54] : memref<3x8x4xf32, #tpu.memory_space<vmem>>, vector<1x8x4xf32>
    %80 = vector.shape_cast %79 : vector<1x8x4xf32> to vector<8x4xf32>
    %cst_55 = arith.constant dense<0.000000e+00> : vector<8x32xf32>
    %81 = tpu.matmul %80, %68, %cst_55 {dimension_numbers = #tpu.dot_dimension_numbers<[1], [0], [0], [1], [0, 0, 1, 1], [], []>} : vector<8x4xf32>, vector<4x32xf32>, vector<8x32xf32> -> vector<8x32xf32>
    %82 = arith.addf %78, %81 : vector<8x32xf32>
    %c2_56 = arith.constant 2 : index
    %c0_57 = arith.constant 0 : index
    %c0_58 = arith.constant 0 : index
    %83 = vector.load %arg7[%c2_56, %c0_57, %c0_58] : memref<3x8x4xf32, #tpu.memory_space<vmem>>, vector<1x8x4xf32>
    %84 = vector.shape_cast %83 : vector<1x8x4xf32> to vector<8x4xf32>
    %cst_59 = arith.constant dense<0.000000e+00> : vector<8x32xf32>
    %85 = tpu.matmul %84, %75, %cst_59 {dimension_numbers = #tpu.dot_dimension_numbers<[1], [0], [0], [1], [0, 0, 1, 1], [], []>} : vector<8x4xf32>, vector<4x32xf32>, vector<8x32xf32> -> vector<8x32xf32>
    %86 = arith.addf %82, %85 : vector<8x32xf32>
    %87 = vector.broadcast %69 : vector<8x1xf32> to vector<8x32xf32>
    %88 = arith.addf %86, %87 : vector<8x32xf32>
    %c0_60 = arith.constant 0 : index
    %c0_61 = arith.constant 0 : index
    %89 = vector.load %arg13[%c0_60, %c0_61] : memref<32x16xf32, #tpu.memory_space<vmem>>, vector<32x16xf32>
    %cst_62 = arith.constant dense<0.000000e+00> : vector<8x16xf32>
    %90 = tpu.matmul %88, %89, %cst_62 {dimension_numbers = #tpu.dot_dimension_numbers<[1], [0], [0], [1], [0, 0, 1, 1], [], []>} : vector<8x32xf32>, vector<32x16xf32>, vector<8x16xf32> -> vector<8x16xf32>
    %c0_63 = arith.constant 0 : index
    %c0_64 = arith.constant 0 : index
    %91 = vector.load %arg14[%c0_63, %c0_64] : memref<8x16xf32, #tpu.memory_space<vmem>>, vector<8x16xf32>
    tpu.vector_store %arg14[%c0_63, %c0_64], %90 {strides = array<i32>} : memref<8x16xf32, #tpu.memory_space<vmem>>, vector<8x16xf32>,
    return
  }
}

</mosaic_0001>

<llo_original>
// kernel: enc_res_block_1d.1
$region0: #{enc_res_block_1d.1}
  #allocation0 [shape = 'u32[]', space=smem, size = 0x4, offset = 0x4, fixed_abs, tag = 'smem constant byte address 0x4 - core index']
  #allocation1 [shape = 'u32[144,128]{1,0:T(1,128)}', space=vmem, size = 0x12000, scoped, tag = 'internal scratch']
  %s0 = inlined_call_operand.vmem [shape: f32[4,32], index: 0, kind: input, shape index: {}]
  %s1 = inlined_call_operand.vmem [shape: f32[4,32], index: 1, kind: input, shape index: {}]
  %s2 = inlined_call_operand.vmem [shape: f32[4,32], index: 2, kind: input, shape index: {}]
  %s3 = inlined_call_operand.vmem [shape: f32[3,4,4], index: 3, kind: input, shape index: {}]
  %s4 = inlined_call_operand.vmem [shape: f32[4,1], index: 4, kind: input, shape index: {}]
  %s5 = inlined_call_operand.vmem [shape: f32[4,32], index: 5, kind: input, shape index: {}]
  %s6 = inlined_call_operand.vmem [shape: f32[4,32], index: 6, kind: input, shape index: {}]
  %s7 = inlined_call_operand.vmem [shape: f32[3,8,4], index: 7, kind: input, shape index: {}]
  %s8 = inlined_call_operand.vmem [shape: f32[8,1], index: 8, kind: input, shape index: {}]
  %s9 = inlined_call_operand.vmem [shape: f32[1,32], index: 9, kind: input, shape index: {}]
  %s10 = inlined_call_operand.vmem [shape: f32[1,32], index: 10, kind: input, shape index: {}]
  %s11 = inlined_call_operand.vmem [shape: f32[32,8], index: 11, kind: input, shape index: {}]
  %s12 = inlined_call_operand.vmem [shape: f32[8,32], index: 12, kind: input, shape index: {}]
  %s13 = inlined_call_operand.vmem [shape: f32[32,16], index: 13, kind: input, shape index: {}]
  %s14 = inlined_call_operand.vmem [shape: f32[8,16], index: 14, kind: output, shape index: {}]
  %s15 = sld [smem:[#allocation0]]
  $region66: #{enc_res_block_1d.1} parent=0
    _
  %s17 = ssub.s32 1, %s15
  %s18 = scalar_select 0, %s17, %s15
  // Predicated region
  $region2: #{enc_res_block_1d.1} parent=0 // pred_check
    _
  $region3: #{enc_res_block_1d.1} parent=0 // pred_check_branch
    %20 = sbr.rel (0) target = $region5
  $region4: #{enc_res_block_1d.1} parent=0 // pred_region
    _
  $region5: #{enc_res_block_1d.1} parent=0 // pred_fallthru
    _
  // Predicated region
  $region6: #{enc_res_block_1d.1} parent=0 // pred_check
    _
  $region7: #{enc_res_block_1d.1} parent=0 // pred_check_branch
    %22 = sbr.rel (0) target = $region9
  $region8: #{enc_res_block_1d.1} parent=0 // pred_region
    _
  $region9: #{enc_res_block_1d.1} parent=0 // pred_fallthru
    _
  // Predicated region
  $region10: #{enc_res_block_1d.1} parent=0 // pred_check
    _
  $region11: #{enc_res_block_1d.1} parent=0 // pred_check_branch
    %24 = sbr.rel (0) target = $region13
  $region12: #{enc_res_block_1d.1} parent=0 // pred_region
    _
  $region13: #{enc_res_block_1d.1} parent=0 // pred_fallthru
    _
  // Predicated region
  $region14: #{enc_res_block_1d.1} parent=0 // pred_check
    _
  $region15: #{enc_res_block_1d.1} parent=0 // pred_check_branch
    %26 = sbr.rel (0) target = $region17
  $region16: #{enc_res_block_1d.1} parent=0 // pred_region
    _
  $region17: #{enc_res_block_1d.1} parent=0 // pred_fallthru
    _
  // Predicated region
  $region18: #{enc_res_block_1d.1} parent=0 // pred_check
    _
  $region19: #{enc_res_block_1d.1} parent=0 // pred_check_branch
    %28 = sbr.rel (0) target = $region21
  $region20: #{enc_res_block_1d.1} parent=0 // pred_region
    _
  $region21: #{enc_res_block_1d.1} parent=0 // pred_fallthru
    _
  // Predicated region
  $region22: #{enc_res_block_1d.1} parent=0 // pred_check
    _
  $region23: #{enc_res_block_1d.1} parent=0 // pred_check_branch
    %30 = sbr.rel (0) target = $region25
  $region24: #{enc_res_block_1d.1} parent=0 // pred_region
    _
  $region25: #{enc_res_block_1d.1} parent=0 // pred_fallthru
    _
  // Predicated region
  $region26: #{enc_res_block_1d.1} parent=0 // pred_check
    _
  $region27: #{enc_res_block_1d.1} parent=0 // pred_check_branch
    %32 = sbr.rel (0) target = $region29
  $region28: #{enc_res_block_1d.1} parent=0 // pred_region
    _
  $region29: #{enc_res_block_1d.1} parent=0 // pred_fallthru
    _
  // Predicated region
  $region30: #{enc_res_block_1d.1} parent=0 // pred_check
    _
  $region31: #{enc_res_block_1d.1} parent=0 // pred_check_branch
    %34 = sbr.rel (0) target = $region33
  $region32: #{enc_res_block_1d.1} parent=0 // pred_region
    _
  $region33: #{enc_res_block_1d.1} parent=0 // pred_fallthru
    _
  // Predicated region
  $region34: #{enc_res_block_1d.1} parent=0 // pred_check
    _
  $region35: #{enc_res_block_1d.1} parent=0 // pred_check_branch
    %36 = sbr.rel (0) target = $region37
  $region36: #{enc_res_block_1d.1} parent=0 // pred_region
    _
  $region37: #{enc_res_block_1d.1} parent=0 // pred_fallthru
    _
  // Predicated region
  $region38: #{enc_res_block_1d.1} parent=0 // pred_check
    _
  $region39: #{enc_res_block_1d.1} parent=0 // pred_check_branch
    %38 = sbr.rel (0) target = $region41
  $region40: #{enc_res_block_1d.1} parent=0 // pred_region
    _
  $region41: #{enc_res_block_1d.1} parent=0 // pred_fallthru
    _
  // Predicated region
  $region42: #{enc_res_block_1d.1} parent=0 // pred_check
    _
  $region43: #{enc_res_block_1d.1} parent=0 // pred_check_branch
    %40 = sbr.rel (0) target = $region45
  $region44: #{enc_res_block_1d.1} parent=0 // pred_region
    _
  $region45: #{enc_res_block_1d.1} parent=0 // pred_fallthru
    _
  // Predicated region
  $region46: #{enc_res_block_1d.1} parent=0 // pred_check
    _
  $region47: #{enc_res_block_1d.1} parent=0 // pred_check_branch
    %42 = sbr.rel (0) target = $region49
  $region48: #{enc_res_block_1d.1} parent=0 // pred_region
    _
  $region49: #{enc_res_block_1d.1} parent=0 // pred_fallthru
    _
  // Predicated region
  $region50: #{enc_res_block_1d.1} parent=0 // pred_check
    _
  $region51: #{enc_res_block_1d.1} parent=0 // pred_check_branch
    %44 = sbr.rel (0) target = $region53
  $region52: #{enc_res_block_1d.1} parent=0 // pred_region
    _
  $region53: #{enc_res_block_1d.1} parent=0 // pred_fallthru
    _
  // Predicated region
  $region54: #{enc_res_block_1d.1} parent=0 // pred_check
    _
  $region55: #{enc_res_block_1d.1} parent=0 // pred_check_branch
    %46 = sbr.rel (0) target = $region57
  $region56: #{enc_res_block_1d.1} parent=0 // pred_region
    _
  $region57: #{enc_res_block_1d.1} parent=0 // pred_fallthru
    _
  %v47 = vld [vmem:[%s0] sm:$0xf]
  %v48 = vld [vmem:[%s9] sm:$0x1]
  %v49 = vld [vmem:[%s10] sm:$0x1]
  %v50 = vld [vmem:[%s11] sm:$0xff]
  %v51 = vld [vmem:[%s11 + $0x8] sm:$0xff]
  %v52 = vld [vmem:[%s11 + $0x10] sm:$0xff]
  %v53 = vld [vmem:[%s11 + $0x18] sm:$0xff]
  %v54 = vld [vmem:[%s12] sm:$0xff]
  %v55 = vld [vmem:[%s1] sm:$0xf]
  %v56 = vld [vmem:[%s2] sm:$0xf]
  %vm57 = vcmask 257024
  %v58 = vsel %vm57, %v47, 0.0
  %v59 = vrot.slane %v58, 4
  %v60 = vadd.f32 %v58, %v59
  %v61 = vrot.slane %v60, 2
  %v62 = vadd.f32 %v60, %v61
  %v63 = vrot.slane %v62, 1
  %v64 = vadd.f32 %v62, %v63
  %vm65 = vcmask 261120
  %v67 = vsel %vm65, %v64, 0
  %69 = vmatprep.subr.mxu0 0.0
  %70 = vmatpush1.msra.mxu0 %v50
  %71 = vmatprep.subr.mxu0 0.0
  %72 = vmatpush1.msra.mxu0 %v51
  %73 = vmatprep.subr.mxu0 0.0
  %74 = vmatpush1.msra.mxu0 %v52
  %75 = vmatprep.subr.mxu0 0.0
  %76 = vmatpush1.msra.mxu0 %v53
  %77 = vmatprep.subr.mxu0 0.0
  %78 = vmatpush1.msra.mxu0 0.0
  %79 = vmatprep.subr.mxu0 0.0
  %80 = vmatpush1.msra.mxu0 0.0
  %81 = vmatprep.subr.mxu0 0.0
  %82 = vmatpush1.msra.mxu0 0.0
  %83 = vmatprep.subr.mxu0 0.0
  %84 = vmatpush1.msra.mxu0 0.0
  %85 = vmatprep.subr.mxu0 0.0
  %86 = vmatpush1.msra.mxu0 0.0
  %87 = vmatprep.subr.mxu0 0.0
  %88 = vmatpush1.msra.mxu0 0.0
  %89 = vmatprep.subr.mxu0 0.0
  %90 = vmatpush1.msra.mxu0 0.0
  %91 = vmatprep.subr.mxu0 0.0
  %92 = vmatpush1.msra.mxu0 0.0
  %93 = vmatprep.subr.mxu0 0.0
  %94 = vmatpush1.msra.mxu0 0.0
  %95 = vmatprep.subr.mxu0 0.0
  %96 = vmatpush1.msra.mxu0 0.0
  %97 = vmatprep.subr.mxu0 0.0
  %98 = vmatpush1.msra.mxu0 0.0
  %99 = vmatprep.subr.mxu0 0.0
  %100 = vmatpush1.msra.mxu0 0.0
  %101 = vmatprep.subr.mxu0 0.0
  %102 = vmatpush1.msra.mxu0 0.0
  %103 = vmatprep.subr.mxu0 0.0
  %104 = vmatpush1.msra.mxu0 0.0
  %105 = vmatprep.subr.mxu0 0.0
  %106 = vmatpush1.msra.mxu0 0.0
  %107 = vmatprep.subr.mxu0 0.0
  %108 = vmatpush1.msra.mxu0 0.0
  %109 = vmatprep.subr.mxu0 0.0
  %110 = vmatpush1.msra.mxu0 0.0
  %111 = vmatprep.subr.mxu0 0.0
  %112 = vmatpush1.msra.mxu0 0.0
  %113 = vmatprep.subr.mxu0 0.0
  %114 = vmatpush1.msra.mxu0 0.0
  %115 = vmatprep.subr.mxu0 0.0
  %116 = vmatpush1.msra.mxu0 0.0
  %117 = vmatprep.subr.mxu0 0.0
  %118 = vmatpush1.msra.mxu0 0.0
  %119 = vmatprep.subr.mxu0 0.0
  %120 = vmatpush1.msra.mxu0 0.0
  %121 = vmatprep.subr.mxu0 0.0
  %122 = vmatpush1.msra.mxu0 0.0
  %123 = vmatprep.subr.mxu0 0.0
  %124 = vmatpush1.msra.mxu0 0.0
  %125 = vmatprep.subr.mxu0 0.0
  %126 = vmatpush1.msra.mxu0 0.0
  %127 = vmatprep.subr.mxu0 0.0
  %128 = vmatpush1.msra.mxu0 0.0
  %129 = vmatprep.subr.mxu0 0.0
  %130 = vmatpush1.msra.mxu0 0.0
  %131 = vmatprep.subr.mxu0 0.0
  %132 = vmatpush1.msra.mxu0 0.0
  %133 = vmatprep.mubr.f32.mxu0 0.0
  %134 = vmatmul.mubr.f32.gmra.mrb[0].mxu0 %v67
  %v135 = vpop.f32.mrb[0].mxu0
  %v136 = vadd.f32 0.0, %v135
  %v137 = vpop.f32.mrb[0].mxu0
  %138 = vdwg.mxu0
  %vm139 = vcmask 64512
  %v141 = vsel %vm139, %v136, 0
  %143 = vmatprep.subr.mxu0 0.0
  %144 = vmatpush1.msra.mxu0 %v54
  %145 = vmatprep.subr.mxu0 0.0
  %146 = vmatpush1.msra.mxu0 0.0
  %147 = vmatprep.subr.mxu0 0.0
  %148 = vmatpush1.msra.mxu0 0.0
  %149 = vmatprep.subr.mxu0 0.0
  %150 = vmatpush1.msra.mxu0 0.0
  %151 = vmatprep.subr.mxu0 0.0
  %152 = vmatpush1.msra.mxu0 0.0
  %153 = vmatprep.subr.mxu0 0.0
  %154 = vmatpush1.msra.mxu0 0.0
  %155 = vmatprep.subr.mxu0 0.0
  %156 = vmatpush1.msra.mxu0 0.0
  %157 = vmatprep.subr.mxu0 0.0
  %158 = vmatpush1.msra.mxu0 0.0
  %159 = vmatprep.subr.mxu0 0.0
  %160 = vmatpush1.msra.mxu0 0.0
  %161 = vmatprep.subr.mxu0 0.0
  %162 = vmatpush1.msra.mxu0 0.0
  %163 = vmatprep.subr.mxu0 0.0
  %164 = vmatpush1.msra.mxu0 0.0
  %165 = vmatprep.subr.mxu0 0.0
  %166 = vmatpush1.msra.mxu0 0.0
  %167 = vmatprep.subr.mxu0 0.0
  %168 = vmatpush1.msra.mxu0 0.0
  %169 = vmatprep.subr.mxu0 0.0
  %170 = vmatpush1.msra.mxu0 0.0
  %171 = vmatprep.subr.mxu0 0.0
  %172 = vmatpush1.msra.mxu0 0.0
  %173 = vmatprep.subr.mxu0 0.0
  %174 = vmatpush1.msra.mxu0 0.0
  %175 = vmatprep.subr.mxu0 0.0
  %176 = vmatpush1.msra.mxu0 0.0
  %177 = vmatprep.subr.mxu0 0.0
  %178 = vmatpush1.msra.mxu0 0.0
  %179 = vmatprep.subr.mxu0 0.0
  %180 = vmatpush1.msra.mxu0 0.0
  %181 = vmatprep.subr.mxu0 0.0
  %182 = vmatpush1.msra.mxu0 0.0
  %183 = vmatprep.subr.mxu0 0.0
  %184 = vmatpush1.msra.mxu0 0.0
  %185 = vmatprep.subr.mxu0 0.0
  %186 = vmatpush1.msra.mxu0 0.0
  %187 = vmatprep.subr.mxu0 0.0
  %188 = vmatpush1.msra.mxu0 0.0
  %189 = vmatprep.subr.mxu0 0.0
  %190 = vmatpush1.msra.mxu0 0.0
  %191 = vmatprep.subr.mxu0 0.0
  %192 = vmatpush1.msra.mxu0 0.0
  %193 = vmatprep.subr.mxu0 0.0
  %194 = vmatpush1.msra.mxu0 0.0
  %195 = vmatprep.subr.mxu0 0.0
  %196 = vmatpush1.msra.mxu0 0.0
  %197 = vmatprep.subr.mxu0 0.0
  %198 = vmatpush1.msra.mxu0 0.0
  %199 = vmatprep.subr.mxu0 0.0
  %200 = vmatpush1.msra.mxu0 0.0
  %201 = vmatprep.subr.mxu0 0.0
  %202 = vmatpush1.msra.mxu0 0.0
  %203 = vmatprep.subr.mxu0 0.0
  %204 = vmatpush1.msra.mxu0 0.0
  %205 = vmatprep.subr.mxu0 0.0
  %206 = vmatpush1.msra.mxu0 0.0
  %207 = vmatprep.mubr.f32.mxu0 0.0
  %208 = vmatmul.mubr.f32.gmra.mrb[0].mxu0 %v141
  %v209 = vpop.f32.mrb[0].mxu0
  %v210 = vadd.f32 0.0, %v209
  %v211 = vpop.f32.mrb[0].mxu0
  %212 = vdwg.mxu0
  %v213 = vlaneseq
  %v214 = vshrl.u32 %v213, 7
  %v215 = vsub.s32 0, %v214
  %v216 = vrot.slane %v210, %v215
  %v217 = vsub.f32 %v47, %v216
  %v218 = vmul.f32 %v217, %v217
  %v219 = vsel %vm57, %v218, 0.0
  %v220 = vrot.slane %v219, 4
  %v221 = vadd.f32 %v219, %v220
  %v222 = vrot.slane %v221, 2
  %v223 = vadd.f32 %v221, %v222
  %v224 = vrot.slane %v223, 1
  %v225 = vadd.f32 %v223, %v224
  %v227 = vsel %vm65, %v225, 0
  %229 = vmatprep.subr.mxu0 0.0
  %230 = vmatpush1.msra.mxu0 %v50
  %231 = vmatprep.subr.mxu0 0.0
  %232 = vmatpush1.msra.mxu0 %v51
  %233 = vmatprep.subr.mxu0 0.0
  %234 = vmatpush1.msra.mxu0 %v52
  %235 = vmatprep.subr.mxu0 0.0
  %236 = vmatpush1.msra.mxu0 %v53
  %237 = vmatprep.subr.mxu0 0.0
  %238 = vmatpush1.msra.mxu0 0.0
  %239 = vmatprep.subr.mxu0 0.0
  %240 = vmatpush1.msra.mxu0 0.0
  %241 = vmatprep.subr.mxu0 0.0
  %242 = vmatpush1.msra.mxu0 0.0
  %243 = vmatprep.subr.mxu0 0.0
  %244 = vmatpush1.msra.mxu0 0.0
  %245 = vmatprep.subr.mxu0 0.0
  %246 = vmatpush1.msra.mxu0 0.0
  %247 = vmatprep.subr.mxu0 0.0
  %248 = vmatpush1.msra.mxu0 0.0
  %249 = vmatprep.subr.mxu0 0.0
  %250 = vmatpush1.msra.mxu0 0.0
  %251 = vmatprep.subr.mxu0 0.0
  %252 = vmatpush1.msra.mxu0 0.0
  %253 = vmatprep.subr.mxu0 0.0
  %254 = vmatpush1.msra.mxu0 0.0
  %255 = vmatprep.subr.mxu0 0.0
  %256 = vmatpush1.msra.mxu0 0.0
  %257 = vmatprep.subr.mxu0 0.0
  %258 = vmatpush1.msra.mxu0 0.0
  %259 = vmatprep.subr.mxu0 0.0
  %260 = vmatpush1.msra.mxu0 0.0
  %261 = vmatprep.subr.mxu0 0.0
  %262 = vmatpush1.msra.mxu0 0.0
  %263 = vmatprep.subr.mxu0 0.0
  %264 = vmatpush1.msra.mxu0 0.0
  %265 = vmatprep.subr.mxu0 0.0
  %266 = vmatpush1.msra.mxu0 0.0
  %267 = vmatprep.subr.mxu0 0.0
  %268 = vmatpush1.msra.mxu0 0.0
  %269 = vmatprep.subr.mxu0 0.0
  %270 = vmatpush1.msra.mxu0 0.0
  %271 = vmatprep.subr.mxu0 0.0
  %272 = vmatpush1.msra.mxu0 0.0
  %273 = vmatprep.subr.mxu0 0.0
  %274 = vmatpush1.msra.mxu0 0.0
  %275 = vmatprep.subr.mxu0 0.0
  %276 = vmatpush1.msra.mxu0 0.0
  %277 = vmatprep.subr.mxu0 0.0
  %278 = vmatpush1.msra.mxu0 0.0
  %279 = vmatprep.subr.mxu0 0.0
  %280 = vmatpush1.msra.mxu0 0.0
  %281 = vmatprep.subr.mxu0 0.0
  %282 = vmatpush1.msra.mxu0 0.0
  %283 = vmatprep.subr.mxu0 0.0
  %284 = vmatpush1.msra.mxu0 0.0
  %285 = vmatprep.subr.mxu0 0.0
  %286 = vmatpush1.msra.mxu0 0.0
  %287 = vmatprep.subr.mxu0 0.0
  %288 = vmatpush1.msra.mxu0 0.0
  %289 = vmatprep.subr.mxu0 0.0
  %290 = vmatpush1.msra.mxu0 0.0
  %291 = vmatprep.subr.mxu0 0.0
  %292 = vmatpush1.msra.mxu0 0.0
  %293 = vmatprep.mubr.f32.mxu0 0.0
  %294 = vmatmul.mubr.f32.gmra.mrb[0].mxu0 %v227
  %v295 = vpop.f32.mrb[0].mxu0
  %v296 = vadd.f32 0.0, %v295
  %v297 = vpop.f32.mrb[0].mxu0
  %298 = vdwg.mxu0
  %v300 = vsel %vm139, %v296, 0
  %302 = vmatprep.subr.mxu0 0.0
  %303 = vmatpush1.msra.mxu0 %v54
  %304 = vmatprep.subr.mxu0 0.0
  %305 = vmatpush1.msra.mxu0 0.0
  %306 = vmatprep.subr.mxu0 0.0
  %307 = vmatpush1.msra.mxu0 0.0
  %308 = vmatprep.subr.mxu0 0.0
  %309 = vmatpush1.msra.mxu0 0.0
  %310 = vmatprep.subr.mxu0 0.0
  %311 = vmatpush1.msra.mxu0 0.0
  %312 = vmatprep.subr.mxu0 0.0
  %313 = vmatpush1.msra.mxu0 0.0
  %314 = vmatprep.subr.mxu0 0.0
  %315 = vmatpush1.msra.mxu0 0.0
  %316 = vmatprep.subr.mxu0 0.0
  %317 = vmatpush1.msra.mxu0 0.0
  %318 = vmatprep.subr.mxu0 0.0
  %319 = vmatpush1.msra.mxu0 0.0
  %320 = vmatprep.subr.mxu0 0.0
  %321 = vmatpush1.msra.mxu0 0.0
  %322 = vmatprep.subr.mxu0 0.0
  %323 = vmatpush1.msra.mxu0 0.0
  %324 = vmatprep.subr.mxu0 0.0
  %325 = vmatpush1.msra.mxu0 0.0
  %326 = vmatprep.subr.mxu0 0.0
  %327 = vmatpush1.msra.mxu0 0.0
  %328 = vmatprep.subr.mxu0 0.0
  %329 = vmatpush1.msra.mxu0 0.0
  %330 = vmatprep.subr.mxu0 0.0
  %331 = vmatpush1.msra.mxu0 0.0
  %332 = vmatprep.subr.mxu0 0.0
  %333 = vmatpush1.msra.mxu0 0.0
  %334 = vmatprep.subr.mxu0 0.0
  %335 = vmatpush1.msra.mxu0 0.0
  %336 = vmatprep.subr.mxu0 0.0
  %337 = vmatpush1.msra.mxu0 0.0
  %338 = vmatprep.subr.mxu0 0.0
  %339 = vmatpush1.msra.mxu0 0.0
  %340 = vmatprep.subr.mxu0 0.0
  %341 = vmatpush1.msra.mxu0 0.0
  %342 = vmatprep.subr.mxu0 0.0
  %343 = vmatpush1.msra.mxu0 0.0
  %344 = vmatprep.subr.mxu0 0.0
  %345 = vmatpush1.msra.mxu0 0.0
  %346 = vmatprep.subr.mxu0 0.0
  %347 = vmatpush1.msra.mxu0 0.0
  %348 = vmatprep.subr.mxu0 0.0
  %349 = vmatpush1.msra.mxu0 0.0
  %350 = vmatprep.subr.mxu0 0.0
  %351 = vmatpush1.msra.mxu0 0.0
  %352 = vmatprep.subr.mxu0 0.0
  %353 = vmatpush1.msra.mxu0 0.0
  %354 = vmatprep.subr.mxu0 0.0
  %355 = vmatpush1.msra.mxu0 0.0
  %356 = vmatprep.subr.mxu0 0.0
  %357 = vmatpush1.msra.mxu0 0.0
  %358 = vmatprep.subr.mxu0 0.0
  %359 = vmatpush1.msra.mxu0 0.0
  %360 = vmatprep.subr.mxu0 0.0
  %361 = vmatpush1.msra.mxu0 0.0
  %362 = vmatprep.subr.mxu0 0.0
  %363 = vmatpush1.msra.mxu0 0.0
  %364 = vmatprep.subr.mxu0 0.0
  %365 = vmatpush1.msra.mxu0 0.0
  %366 = vmatprep.mubr.f32.mxu0 0.0
  %367 = vmatmul.mubr.f32.gmra.mrb[0].mxu0 %v300
  %v368 = vpop.f32.mrb[0].mxu0
  %v369 = vadd.f32 1e-05, %v368
  %v370 = vpop.f32.mrb[0].mxu0
  %371 = vdwg.mxu0
  %v372 = vrsqrt.pop %v369
  %v373 = vlaneseq
  %v374 = vshrl.u32 %v373, 7
  %v375 = vsub.s32 0, %v374
  %v376 = vrot.slane %v372, %v375
  %v377 = vmul.f32 %v217, %v376
  %v378 = vmul.f32 %v377, %v55
  %v379 = vadd.f32 %v378, %v56
  %v380 = vmax.f32 %v379, 0.0
  %v381 = vld [vmem:[%s4] sm:$0xf]
  %vm382 = vcmask 1047808
  %383 = vrot.lane.b32.xlu0 %v380, 32
  %v384 = vpop.permute.xlu0 %383
  %v385 = vsel %vm382, %v384, %v380
  %386 = vrot.lane.b32.xlu0 %v385, 32
  %v387 = vpop.permute.xlu0 %386
  %v388 = vsel %vm382, %v387, %v380
  %v390 = vlaneseq
  %v391 = vshrl.u32 %v390, 7
  %v392 = vsub.s32 0, %v391
  %v393 = vrot.slane %v48, %v392
  %394 = vrot.lane.b32.xlu0 %v393, 31
  %v395 = vpop.permute.xlu0 %394
  %v397 = vmul.f32 %v388, %v395
  %v399 = vlaneseq
  %v400 = vshrl.u32 %v399, 7
  %v401 = vsub.s32 0, %v400
  %v402 = vrot.slane %v49, %v401
  %403 = vrot.lane.b32.xlu0 %v402, 1
  %v404 = vpop.permute.xlu0 %403
  %v406 = vmul.f32 %v388, %v404
  %v407 = vld [vmem:[%s3] sm:$0xf]
  %s408 = scalar_lea.vmem %s3, 4
  %v409 = vld [vmem:[%s408] sm:$0xf]
  %vm410 = vcmask 31744
  %v412 = vsel %vm410, %v409, 0
  %vm414 = vcmask 1043456
  %v416 = vsel %vm414, %v380, 0
  %418 = vmatprep.subr.mxu0 0.0
  %419 = vmatpush1.msra.mxu0 %v416
  %420 = vmatprep.subr.mxu0 0.0
  %421 = vmatpush1.msra.mxu0 0.0
  %422 = vmatprep.subr.mxu0 0.0
  %423 = vmatpush1.msra.mxu0 0.0
  %424 = vmatprep.subr.mxu0 0.0
  %425 = vmatpush1.msra.mxu0 0.0
  %426 = vmatprep.subr.mxu0 0.0
  %427 = vmatpush1.msra.mxu0 0.0
  %428 = vmatprep.subr.mxu0 0.0
  %429 = vmatpush1.msra.mxu0 0.0
  %430 = vmatprep.subr.mxu0 0.0
  %431 = vmatpush1.msra.mxu0 0.0
  %432 = vmatprep.subr.mxu0 0.0
  %433 = vmatpush1.msra.mxu0 0.0
  %434 = vmatprep.subr.mxu0 0.0
  %435 = vmatpush1.msra.mxu0 0.0
  %436 = vmatprep.subr.mxu0 0.0
  %437 = vmatpush1.msra.mxu0 0.0
  %438 = vmatprep.subr.mxu0 0.0
  %439 = vmatpush1.msra.mxu0 0.0
  %440 = vmatprep.subr.mxu0 0.0
  %441 = vmatpush1.msra.mxu0 0.0
  %442 = vmatprep.subr.mxu0 0.0
  %443 = vmatpush1.msra.mxu0 0.0
  %444 = vmatprep.subr.mxu0 0.0
  %445 = vmatpush1.msra.mxu0 0.0
  %446 = vmatprep.subr.mxu0 0.0
  %447 = vmatpush1.msra.mxu0 0.0
  %448 = vmatprep.subr.mxu0 0.0
  %449 = vmatpush1.msra.mxu0 0.0
  %450 = vmatprep.subr.mxu0 0.0
  %451 = vmatpush1.msra.mxu0 0.0
  %452 = vmatprep.subr.mxu0 0.0
  %453 = vmatpush1.msra.mxu0 0.0
  %454 = vmatprep.subr.mxu0 0.0
  %455 = vmatpush1.msra.mxu0 0.0
  %456 = vmatprep.subr.mxu0 0.0
  %457 = vmatpush1.msra.mxu0 0.0
  %458 = vmatprep.subr.mxu0 0.0
  %459 = vmatpush1.msra.mxu0 0.0
  %460 = vmatprep.subr.mxu0 0.0
  %461 = vmatpush1.msra.mxu0 0.0
  %462 = vmatprep.subr.mxu0 0.0
  %463 = vmatpush1.msra.mxu0 0.0
  %464 = vmatprep.subr.mxu0 0.0
  %465 = vmatpush1.msra.mxu0 0.0
  %466 = vmatprep.subr.mxu0 0.0
  %467 = vmatpush1.msra.mxu0 0.0
  %468 = vmatprep.subr.mxu0 0.0
  %469 = vmatpush1.msra.mxu0 0.0
  %470 = vmatprep.subr.mxu0 0.0
  %471 = vmatpush1.msra.mxu0 0.0
  %472 = vmatprep.subr.mxu0 0.0
  %473 = vmatpush1.msra.mxu0 0.0
  %474 = vmatprep.subr.mxu0 0.0
  %475 = vmatpush1.msra.mxu0 0.0
  %476 = vmatprep.subr.mxu0 0.0
  %477 = vmatpush1.msra.mxu0 0.0
  %478 = vmatprep.subr.mxu0 0.0
  %479 = vmatpush1.msra.mxu0 0.0
  %480 = vmatprep.subr.mxu0 0.0
  %481 = vmatpush1.msra.mxu0 0.0
  %482 = vmatprep.mubr.f32.mxu0 0.0
  %483 = vmatmul.mubr.f32.gmra.mrb[0].mxu0 %v412
  %v484 = vpop.f32.mrb[0].mxu0
  %v485 = vadd.f32 0.0, %v484
  %v486 = vpop.f32.mrb[0].mxu0
  %487 = vdwg.mxu0
  %489 = vrot.lane.b32.xlu0 %v397, 97
  %v490 = vpop.permute.xlu0 %489
  %v492 = vsel %vm410, %v407, 0
  %v494 = vsel %vm414, %v490, 0
  %496 = vmatprep.subr.mxu0 0.0
  %497 = vmatpush1.msra.mxu0 %v494
  %498 = vmatprep.subr.mxu0 0.0
  %499 = vmatpush1.msra.mxu0 0.0
  %500 = vmatprep.subr.mxu0 0.0
  %501 = vmatpush1.msra.mxu0 0.0
  %502 = vmatprep.subr.mxu0 0.0
  %503 = vmatpush1.msra.mxu0 0.0
  %504 = vmatprep.subr.mxu0 0.0
  %505 = vmatpush1.msra.mxu0 0.0
  %506 = vmatprep.subr.mxu0 0.0
  %507 = vmatpush1.msra.mxu0 0.0
  %508 = vmatprep.subr.mxu0 0.0
  %509 = vmatpush1.msra.mxu0 0.0
  %510 = vmatprep.subr.mxu0 0.0
  %511 = vmatpush1.msra.mxu0 0.0
  %512 = vmatprep.subr.mxu0 0.0
  %513 = vmatpush1.msra.mxu0 0.0
  %514 = vmatprep.subr.mxu0 0.0
  %515 = vmatpush1.msra.mxu0 0.0
  %516 = vmatprep.subr.mxu0 0.0
  %517 = vmatpush1.msra.mxu0 0.0
  %518 = vmatprep.subr.mxu0 0.0
  %519 = vmatpush1.msra.mxu0 0.0
  %520 = vmatprep.subr.mxu0 0.0
  %521 = vmatpush1.msra.mxu0 0.0
  %522 = vmatprep.subr.mxu0 0.0
  %523 = vmatpush1.msra.mxu0 0.0
  %524 = vmatprep.subr.mxu0 0.0
  %525 = vmatpush1.msra.mxu0 0.0
  %526 = vmatprep.subr.mxu0 0.0
  %527 = vmatpush1.msra.mxu0 0.0
  %528 = vmatprep.subr.mxu0 0.0
  %529 = vmatpush1.msra.mxu0 0.0
  %530 = vmatprep.subr.mxu0 0.0
  %531 = vmatpush1.msra.mxu0 0.0
  %532 = vmatprep.subr.mxu0 0.0
  %533 = vmatpush1.msra.mxu0 0.0
  %534 = vmatprep.subr.mxu0 0.0
  %535 = vmatpush1.msra.mxu0 0.0
  %536 = vmatprep.subr.mxu0 0.0
  %537 = vmatpush1.msra.mxu0 0.0
  %538 = vmatprep.subr.mxu0 0.0
  %539 = vmatpush1.msra.mxu0 0.0
  %540 = vmatprep.subr.mxu0 0.0
  %541 = vmatpush1.msra.mxu0 0.0
  %542 = vmatprep.subr.mxu0 0.0
  %543 = vmatpush1.msra.mxu0 0.0
  %544 = vmatprep.subr.mxu0 0.0
  %545 = vmatpush1.msra.mxu0 0.0
  %546 = vmatprep.subr.mxu0 0.0
  %547 = vmatpush1.msra.mxu0 0.0
  %548 = vmatprep.subr.mxu0 0.0
  %549 = vmatpush1.msra.mxu0 0.0
  %550 = vmatprep.subr.mxu0 0.0
  %551 = vmatpush1.msra.mxu0 0.0
  %552 = vmatprep.subr.mxu0 0.0
  %553 = vmatpush1.msra.mxu0 0.0
  %554 = vmatprep.subr.mxu0 0.0
  %555 = vmatpush1.msra.mxu0 0.0
  %556 = vmatprep.subr.mxu0 0.0
  %557 = vmatpush1.msra.mxu0 0.0
  %558 = vmatprep.subr.mxu0 0.0
  %559 = vmatpush1.msra.mxu0 0.0
  %560 = vmatprep.mubr.f32.mxu0 0.0
  %561 = vmatmul.mubr.f32.gmra.mrb[0].mxu0 %v492
  %v562 = vpop.f32.mrb[0].mxu0
  %v563 = vadd.f32 %v485, %v562
  %v564 = vpop.f32.mrb[0].mxu0
  %565 = vdwg.mxu0
  %s566 = scalar_lea.vmem %s3, 8
  %v567 = vld [vmem:[%s566] sm:$0xf]
  %569 = vrot.lane.b32.xlu0 %v406, 127
  %v570 = vpop.permute.xlu0 %569
  %v572 = vsel %vm410, %v567, 0
  %v574 = vsel %vm414, %v570, 0
  %576 = vmatprep.subr.mxu0 0.0
  %577 = vmatpush1.msra.mxu0 %v574
  %578 = vmatprep.subr.mxu0 0.0
  %579 = vmatpush1.msra.mxu0 0.0
  %580 = vmatprep.subr.mxu0 0.0
  %581 = vmatpush1.msra.mxu0 0.0
  %582 = vmatprep.subr.mxu0 0.0
  %583 = vmatpush1.msra.mxu0 0.0
  %584 = vmatprep.subr.mxu0 0.0
  %585 = vmatpush1.msra.mxu0 0.0
  %586 = vmatprep.subr.mxu0 0.0
  %587 = vmatpush1.msra.mxu0 0.0
  %588 = vmatprep.subr.mxu0 0.0
  %589 = vmatpush1.msra.mxu0 0.0
  %590 = vmatprep.subr.mxu0 0.0
  %591 = vmatpush1.msra.mxu0 0.0
  %592 = vmatprep.subr.mxu0 0.0
  %593 = vmatpush1.msra.mxu0 0.0
  %594 = vmatprep.subr.mxu0 0.0
  %595 = vmatpush1.msra.mxu0 0.0
  %596 = vmatprep.subr.mxu0 0.0
  %597 = vmatpush1.msra.mxu0 0.0
  %598 = vmatprep.subr.mxu0 0.0
  %599 = vmatpush1.msra.mxu0 0.0
  %600 = vmatprep.subr.mxu0 0.0
  %601 = vmatpush1.msra.mxu0 0.0
  %602 = vmatprep.subr.mxu0 0.0
  %603 = vmatpush1.msra.mxu0 0.0
  %604 = vmatprep.subr.mxu0 0.0
  %605 = vmatpush1.msra.mxu0 0.0
  %606 = vmatprep.subr.mxu0 0.0
  %607 = vmatpush1.msra.mxu0 0.0
  %608 = vmatprep.subr.mxu0 0.0
  %609 = vmatpush1.msra.mxu0 0.0
  %610 = vmatprep.subr.mxu0 0.0
  %611 = vmatpush1.msra.mxu0 0.0
  %612 = vmatprep.subr.mxu0 0.0
  %613 = vmatpush1.msra.mxu0 0.0
  %614 = vmatprep.subr.mxu0 0.0
  %615 = vmatpush1.msra.mxu0 0.0
  %616 = vmatprep.subr.mxu0 0.0
  %617 = vmatpush1.msra.mxu0 0.0
  %618 = vmatprep.subr.mxu0 0.0
  %619 = vmatpush1.msra.mxu0 0.0
  %620 = vmatprep.subr.mxu0 0.0
  %621 = vmatpush1.msra.mxu0 0.0
  %622 = vmatprep.subr.mxu0 0.0
  %623 = vmatpush1.msra.mxu0 0.0
  %624 = vmatprep.subr.mxu0 0.0
  %625 = vmatpush1.msra.mxu0 0.0
  %626 = vmatprep.subr.mxu0 0.0
  %627 = vmatpush1.msra.mxu0 0.0
  %628 = vmatprep.subr.mxu0 0.0
  %629 = vmatpush1.msra.mxu0 0.0
  %630 = vmatprep.subr.mxu0 0.0
  %631 = vmatpush1.msra.mxu0 0.0
  %632 = vmatprep.subr.mxu0 0.0
  %633 = vmatpush1.msra.mxu0 0.0
  %634 = vmatprep.subr.mxu0 0.0
  %635 = vmatpush1.msra.mxu0 0.0
  %636 = vmatprep.subr.mxu0 0.0
  %637 = vmatpush1.msra.mxu0 0.0
  %638 = vmatprep.subr.mxu0 0.0
  %639 = vmatpush1.msra.mxu0 0.0
  %640 = vmatprep.mubr.f32.mxu0 0.0
  %641 = vmatmul.mubr.f32.gmra.mrb[0].mxu0 %v572
  %v642 = vpop.f32.mrb[0].mxu0
  %v643 = vadd.f32 0.0, %v642
  %v644 = vpop.f32.mrb[0].mxu0
  %645 = vdwg.mxu0
  %v646 = vadd.f32 %v563, %v643
  %648 = vset.pattern.permute.xlu0 0
  %649 = vperm.xlu0 %648, %v381
  %v650 = vpop.permute.xlu0 %649
  %v652 = vadd.f32 %v646, %v650
  %v653 = vld [vmem:[%s5] sm:$0xf]
  %v654 = vld [vmem:[%s6] sm:$0xf]
  %v655 = vsel %vm57, %v652, 0.0
  %v656 = vrot.slane %v655, 4
  %v657 = vadd.f32 %v655, %v656
  %v658 = vrot.slane %v657, 2
  %v659 = vadd.f32 %v657, %v658
  %v660 = vrot.slane %v659, 1
  %v661 = vadd.f32 %v659, %v660
  %v663 = vsel %vm65, %v661, 0
  %665 = vmatprep.subr.mxu0 0.0
  %666 = vmatpush1.msra.mxu0 %v50
  %667 = vmatprep.subr.mxu0 0.0
  %668 = vmatpush1.msra.mxu0 %v51
  %669 = vmatprep.subr.mxu0 0.0
  %670 = vmatpush1.msra.mxu0 %v52
  %671 = vmatprep.subr.mxu0 0.0
  %672 = vmatpush1.msra.mxu0 %v53
  %673 = vmatprep.subr.mxu0 0.0
  %674 = vmatpush1.msra.mxu0 0.0
  %675 = vmatprep.subr.mxu0 0.0
  %676 = vmatpush1.msra.mxu0 0.0
  %677 = vmatprep.subr.mxu0 0.0
  %678 = vmatpush1.msra.mxu0 0.0
  %679 = vmatprep.subr.mxu0 0.0
  %680 = vmatpush1.msra.mxu0 0.0
  %681 = vmatprep.subr.mxu0 0.0
  %682 = vmatpush1.msra.mxu0 0.0
  %683 = vmatprep.subr.mxu0 0.0
  %684 = vmatpush1.msra.mxu0 0.0
  %685 = vmatprep.subr.mxu0 0.0
  %686 = vmatpush1.msra.mxu0 0.0
  %687 = vmatprep.subr.mxu0 0.0
  %688 = vmatpush1.msra.mxu0 0.0
  %689 = vmatprep.subr.mxu0 0.0
  %690 = vmatpush1.msra.mxu0 0.0
  %691 = vmatprep.subr.mxu0 0.0
  %692 = vmatpush1.msra.mxu0 0.0
  %693 = vmatprep.subr.mxu0 0.0
  %694 = vmatpush1.msra.mxu0 0.0
  %695 = vmatprep.subr.mxu0 0.0
  %696 = vmatpush1.msra.mxu0 0.0
  %697 = vmatprep.subr.mxu0 0.0
  %698 = vmatpush1.msra.mxu0 0.0
  %699 = vmatprep.subr.mxu0 0.0
  %700 = vmatpush1.msra.mxu0 0.0
  %701 = vmatprep.subr.mxu0 0.0
  %702 = vmatpush1.msra.mxu0 0.0
  %703 = vmatprep.subr.mxu0 0.0
  %704 = vmatpush1.msra.mxu0 0.0
  %705 = vmatprep.subr.mxu0 0.0
  %706 = vmatpush1.msra.mxu0 0.0
  %707 = vmatprep.subr.mxu0 0.0
  %708 = vmatpush1.msra.mxu0 0.0
  %709 = vmatprep.subr.mxu0 0.0
  %710 = vmatpush1.msra.mxu0 0.0
  %711 = vmatprep.subr.mxu0 0.0
  %712 = vmatpush1.msra.mxu0 0.0
  %713 = vmatprep.subr.mxu0 0.0
  %714 = vmatpush1.msra.mxu0 0.0
  %715 = vmatprep.subr.mxu0 0.0
  %716 = vmatpush1.msra.mxu0 0.0
  %717 = vmatprep.subr.mxu0 0.0
  %718 = vmatpush1.msra.mxu0 0.0
  %719 = vmatprep.subr.mxu0 0.0
  %720 = vmatpush1.msra.mxu0 0.0
  %721 = vmatprep.subr.mxu0 0.0
  %722 = vmatpush1.msra.mxu0 0.0
  %723 = vmatprep.subr.mxu0 0.0
  %724 = vmatpush1.msra.mxu0 0.0
  %725 = vmatprep.subr.mxu0 0.0
  %726 = vmatpush1.msra.mxu0 0.0
  %727 = vmatprep.subr.mxu0 0.0
  %728 = vmatpush1.msra.mxu0 0.0
  %729 = vmatprep.mubr.f32.mxu0 0.0
  %730 = vmatmul.mubr.f32.gmra.mrb[0].mxu0 %v663
  %v731 = vpop.f32.mrb[0].mxu0
  %v732 = vadd.f32 0.0, %v731
  %v733 = vpop.f32.mrb[0].mxu0
  %734 = vdwg.mxu0
  %v736 = vsel %vm139, %v732, 0
  %738 = vmatprep.subr.mxu0 0.0
  %739 = vmatpush1.msra.mxu0 %v54
  %740 = vmatprep.subr.mxu0 0.0
  %741 = vmatpush1.msra.mxu0 0.0
  %742 = vmatprep.subr.mxu0 0.0
  %743 = vmatpush1.msra.mxu0 0.0
  %744 = vmatprep.subr.mxu0 0.0
  %745 = vmatpush1.msra.mxu0 0.0
  %746 = vmatprep.subr.mxu0 0.0
  %747 = vmatpush1.msra.mxu0 0.0
  %748 = vmatprep.subr.mxu0 0.0
  %749 = vmatpush1.msra.mxu0 0.0
  %750 = vmatprep.subr.mxu0 0.0
  %751 = vmatpush1.msra.mxu0 0.0
  %752 = vmatprep.subr.mxu0 0.0
  %753 = vmatpush1.msra.mxu0 0.0
  %754 = vmatprep.subr.mxu0 0.0
  %755 = vmatpush1.msra.mxu0 0.0
  %756 = vmatprep.subr.mxu0 0.0
  %757 = vmatpush1.msra.mxu0 0.0
  %758 = vmatprep.subr.mxu0 0.0
  %759 = vmatpush1.msra.mxu0 0.0
  %760 = vmatprep.subr.mxu0 0.0
  %761 = vmatpush1.msra.mxu0 0.0
  %762 = vmatprep.subr.mxu0 0.0
  %763 = vmatpush1.msra.mxu0 0.0
  %764 = vmatprep.subr.mxu0 0.0
  %765 = vmatpush1.msra.mxu0 0.0
  %766 = vmatprep.subr.mxu0 0.0
  %767 = vmatpush1.msra.mxu0 0.0
  %768 = vmatprep.subr.mxu0 0.0
  %769 = vmatpush1.msra.mxu0 0.0
  %770 = vmatprep.subr.mxu0 0.0
  %771 = vmatpush1.msra.mxu0 0.0
  %772 = vmatprep.subr.mxu0 0.0
  %773 = vmatpush1.msra.mxu0 0.0
  %774 = vmatprep.subr.mxu0 0.0
  %775 = vmatpush1.msra.mxu0 0.0
  %776 = vmatprep.subr.mxu0 0.0
  %777 = vmatpush1.msra.mxu0 0.0
  %778 = vmatprep.subr.mxu0 0.0
  %779 = vmatpush1.msra.mxu0 0.0
  %780 = vmatprep.subr.mxu0 0.0
  %781 = vmatpush1.msra.mxu0 0.0
  %782 = vmatprep.subr.mxu0 0.0
  %783 = vmatpush1.msra.mxu0 0.0
  %784 = vmatprep.subr.mxu0 0.0
  %785 = vmatpush1.msra.mxu0 0.0
  %786 = vmatprep.subr.mxu0 0.0
  %787 = vmatpush1.msra.mxu0 0.0
  %788 = vmatprep.subr.mxu0 0.0
  %789 = vmatpush1.msra.mxu0 0.0
  %790 = vmatprep.subr.mxu0 0.0
  %791 = vmatpush1.msra.mxu0 0.0
  %792 = vmatprep.subr.mxu0 0.0
  %793 = vmatpush1.msra.mxu0 0.0
  %794 = vmatprep.subr.mxu0 0.0
  %795 = vmatpush1.msra.mxu0 0.0
  %796 = vmatprep.subr.mxu0 0.0
  %797 = vmatpush1.msra.mxu0 0.0
  %798 = vmatprep.subr.mxu0 0.0
  %799 = vmatpush1.msra.mxu0 0.0
  %800 = vmatprep.subr.mxu0 0.0
  %801 = vmatpush1.msra.mxu0 0.0
  %802 = vmatprep.mubr.f32.mxu0 0.0
  %803 = vmatmul.mubr.f32.gmra.mrb[0].mxu0 %v736
  %v804 = vpop.f32.mrb[0].mxu0
  %v805 = vadd.f32 0.0, %v804
  %v806 = vpop.f32.mrb[0].mxu0
  %807 = vdwg.mxu0
  %v808 = vlaneseq
  %v809 = vshrl.u32 %v808, 7
  %v810 = vsub.s32 0, %v809
  %v811 = vrot.slane %v805, %v810
  %v812 = vsub.f32 %v652, %v811
  %v813 = vmul.f32 %v812, %v812
  %v814 = vsel %vm57, %v813, 0.0
  %v815 = vrot.slane %v814, 4
  %v816 = vadd.f32 %v814, %v815
  %v817 = vrot.slane %v816, 2
  %v818 = vadd.f32 %v816, %v817
  %v819 = vrot.slane %v818, 1
  %v820 = vadd.f32 %v818, %v819
  %v822 = vsel %vm65, %v820, 0
  %824 = vmatprep.subr.mxu0 0.0
  %825 = vmatpush1.msra.mxu0 %v50
  %826 = vmatprep.subr.mxu0 0.0
  %827 = vmatpush1.msra.mxu0 %v51
  %828 = vmatprep.subr.mxu0 0.0
  %829 = vmatpush1.msra.mxu0 %v52
  %830 = vmatprep.subr.mxu0 0.0
  %831 = vmatpush1.msra.mxu0 %v53
  %832 = vmatprep.subr.mxu0 0.0
  %833 = vmatpush1.msra.mxu0 0.0
  %834 = vmatprep.subr.mxu0 0.0
  %835 = vmatpush1.msra.mxu0 0.0
  %836 = vmatprep.subr.mxu0 0.0
  %837 = vmatpush1.msra.mxu0 0.0
  %838 = vmatprep.subr.mxu0 0.0
  %839 = vmatpush1.msra.mxu0 0.0
  %840 = vmatprep.subr.mxu0 0.0
  %841 = vmatpush1.msra.mxu0 0.0
  %842 = vmatprep.subr.mxu0 0.0
  %843 = vmatpush1.msra.mxu0 0.0
  %844 = vmatprep.subr.mxu0 0.0
  %845 = vmatpush1.msra.mxu0 0.0
  %846 = vmatprep.subr.mxu0 0.0
  %847 = vmatpush1.msra.mxu0 0.0
  %848 = vmatprep.subr.mxu0 0.0
  %849 = vmatpush1.msra.mxu0 0.0
  %850 = vmatprep.subr.mxu0 0.0
  %851 = vmatpush1.msra.mxu0 0.0
  %852 = vmatprep.subr.mxu0 0.0
  %853 = vmatpush1.msra.mxu0 0.0
  %854 = vmatprep.subr.mxu0 0.0
  %855 = vmatpush1.msra.mxu0 0.0
  %856 = vmatprep.subr.mxu0 0.0
  %857 = vmatpush1.msra.mxu0 0.0
  %858 = vmatprep.subr.mxu0 0.0
  %859 = vmatpush1.msra.mxu0 0.0
  %860 = vmatprep.subr.mxu0 0.0
  %861 = vmatpush1.msra.mxu0 0.0
  %862 = vmatprep.subr.mxu0 0.0
  %863 = vmatpush1.msra.mxu0 0.0
  %864 = vmatprep.subr.mxu0 0.0
  %865 = vmatpush1.msra.mxu0 0.0
  %866 = vmatprep.subr.mxu0 0.0
  %867 = vmatpush1.msra.mxu0 0.0
  %868 = vmatprep.subr.mxu0 0.0
  %869 = vmatpush1.msra.mxu0 0.0
  %870 = vmatprep.subr.mxu0 0.0
  %871 = vmatpush1.msra.mxu0 0.0
  %872 = vmatprep.subr.mxu0 0.0
  %873 = vmatpush1.msra.mxu0 0.0
  %874 = vmatprep.subr.mxu0 0.0
  %875 = vmatpush1.msra.mxu0 0.0
  %876 = vmatprep.subr.mxu0 0.0
  %877 = vmatpush1.msra.mxu0 0.0
  %878 = vmatprep.subr.mxu0 0.0
  %879 = vmatpush1.msra.mxu0 0.0
  %880 = vmatprep.subr.mxu0 0.0
  %881 = vmatpush1.msra.mxu0 0.0
  %882 = vmatprep.subr.mxu0 0.0
  %883 = vmatpush1.msra.mxu0 0.0
  %884 = vmatprep.subr.mxu0 0.0
  %885 = vmatpush1.msra.mxu0 0.0
  %886 = vmatprep.subr.mxu0 0.0
  %887 = vmatpush1.msra.mxu0 0.0
  %888 = vmatprep.mubr.f32.mxu0 0.0
  %889 = vmatmul.mubr.f32.gmra.mrb[0].mxu0 %v822
  %v890 = vpop.f32.mrb[0].mxu0
  %v891 = vadd.f32 0.0, %v890
  %v892 = vpop.f32.mrb[0].mxu0
  %893 = vdwg.mxu0
  %v895 = vsel %vm139, %v891, 0
  %897 = vmatprep.subr.mxu0 0.0
  %898 = vmatpush1.msra.mxu0 %v54
  %899 = vmatprep.subr.mxu0 0.0
  %900 = vmatpush1.msra.mxu0 0.0
  %901 = vmatprep.subr.mxu0 0.0
  %902 = vmatpush1.msra.mxu0 0.0
  %903 = vmatprep.subr.mxu0 0.0
  %904 = vmatpush1.msra.mxu0 0.0
  %905 = vmatprep.subr.mxu0 0.0
  %906 = vmatpush1.msra.mxu0 0.0
  %907 = vmatprep.subr.mxu0 0.0
  %908 = vmatpush1.msra.mxu0 0.0
  %909 = vmatprep.subr.mxu0 0.0
  %910 = vmatpush1.msra.mxu0 0.0
  %911 = vmatprep.subr.mxu0 0.0
  %912 = vmatpush1.msra.mxu0 0.0
  %913 = vmatprep.subr.mxu0 0.0
  %914 = vmatpush1.msra.mxu0 0.0
  %915 = vmatprep.subr.mxu0 0.0
  %916 = vmatpush1.msra.mxu0 0.0
  %917 = vmatprep.subr.mxu0 0.0
  %918 = vmatpush1.msra.mxu0 0.0
  %919 = vmatprep.subr.mxu0 0.0
  %920 = vmatpush1.msra.mxu0 0.0
  %921 = vmatprep.subr.mxu0 0.0
  %922 = vmatpush1.msra.mxu0 0.0
  %923 = vmatprep.subr.mxu0 0.0
  %924 = vmatpush1.msra.mxu0 0.0
  %925 = vmatprep.subr.mxu0 0.0
  %926 = vmatpush1.msra.mxu0 0.0
  %927 = vmatprep.subr.mxu0 0.0
  %928 = vmatpush1.msra.mxu0 0.0
  %929 = vmatprep.subr.mxu0 0.0
  %930 = vmatpush1.msra.mxu0 0.0
  %931 = vmatprep.subr.mxu0 0.0
  %932 = vmatpush1.msra.mxu0 0.0
  %933 = vmatprep.subr.mxu0 0.0
  %934 = vmatpush1.msra.mxu0 0.0
  %935 = vmatprep.subr.mxu0 0.0
  %936 = vmatpush1.msra.mxu0 0.0
  %937 = vmatprep.subr.mxu0 0.0
  %938 = vmatpush1.msra.mxu0 0.0
  %939 = vmatprep.subr.mxu0 0.0
  %940 = vmatpush1.msra.mxu0 0.0
  %941 = vmatprep.subr.mxu0 0.0
  %942 = vmatpush1.msra.mxu0 0.0
  %943 = vmatprep.subr.mxu0 0.0
  %944 = vmatpush1.msra.mxu0 0.0
  %945 = vmatprep.subr.mxu0 0.0
  %946 = vmatpush1.msra.mxu0 0.0
  %947 = vmatprep.subr.mxu0 0.0
  %948 = vmatpush1.msra.mxu0 0.0
  %949 = vmatprep.subr.mxu0 0.0
  %950 = vmatpush1.msra.mxu0 0.0
  %951 = vmatprep.subr.mxu0 0.0
  %952 = vmatpush1.msra.mxu0 0.0
  %953 = vmatprep.subr.mxu0 0.0
  %954 = vmatpush1.msra.mxu0 0.0
  %955 = vmatprep.subr.mxu0 0.0
  %956 = vmatpush1.msra.mxu0 0.0
  %957 = vmatprep.subr.mxu0 0.0
  %958 = vmatpush1.msra.mxu0 0.0
  %959 = vmatprep.subr.mxu0 0.0
  %960 = vmatpush1.msra.mxu0 0.0
  %961 = vmatprep.mubr.f32.mxu0 0.0
  %962 = vmatmul.mubr.f32.gmra.mrb[0].mxu0 %v895
  %v963 = vpop.f32.mrb[0].mxu0
  %v964 = vadd.f32 1e-05, %v963
  %v965 = vpop.f32.mrb[0].mxu0
  %966 = vdwg.mxu0
  %v967 = vrsqrt.pop %v964
  %v968 = vlaneseq
  %v969 = vshrl.u32 %v968, 7
  %v970 = vsub.s32 0, %v969
  %v971 = vrot.slane %v967, %v970
  %v972 = vmul.f32 %v812, %v971
  %v973 = vmul.f32 %v972, %v653
  %v974 = vadd.f32 %v973, %v654
  %v975 = vmax.f32 %v974, 0.0
  %v976 = vld [vmem:[%s8] sm:$0xff]
  %977 = vrot.lane.b32.xlu0 %v975, 32
  %v978 = vpop.permute.xlu0 %977
  %v979 = vsel %vm382, %v978, %v975
  %980 = vrot.lane.b32.xlu0 %v979, 32
  %v981 = vpop.permute.xlu0 %980
  %v982 = vsel %vm382, %v981, %v975
  %v983 = vmul.f32 %v982, %v395
  %v984 = vmul.f32 %v982, %v404
  %v985 = vld [vmem:[%s7] sm:$0xff]
  %s986 = scalar_lea.vmem %s7, 8
  %v987 = vld [vmem:[%s986] sm:$0xff]
  %v989 = vsel %vm410, %v987, 0
  %v992 = vsel %vm414, %v975, 0
  %994 = vmatprep.subr.mxu0 0.0
  %995 = vmatpush1.msra.mxu0 %v992
  %996 = vmatprep.subr.mxu0 0.0
  %997 = vmatpush1.msra.mxu0 0.0
  %998 = vmatprep.subr.mxu0 0.0
  %999 = vmatpush1.msra.mxu0 0.0
  %1000 = vmatprep.subr.mxu0 0.0
  %1001 = vmatpush1.msra.mxu0 0.0
  %1002 = vmatprep.subr.mxu0 0.0
  %1003 = vmatpush1.msra.mxu0 0.0
  %1004 = vmatprep.subr.mxu0 0.0
  %1005 = vmatpush1.msra.mxu0 0.0
  %1006 = vmatprep.subr.mxu0 0.0
  %1007 = vmatpush1.msra.mxu0 0.0
  %1008 = vmatprep.subr.mxu0 0.0
  %1009 = vmatpush1.msra.mxu0 0.0
  %1010 = vmatprep.subr.mxu0 0.0
  %1011 = vmatpush1.msra.mxu0 0.0
  %1012 = vmatprep.subr.mxu0 0.0
  %1013 = vmatpush1.msra.mxu0 0.0
  %1014 = vmatprep.subr.mxu0 0.0
  %1015 = vmatpush1.msra.mxu0 0.0
  %1016 = vmatprep.subr.mxu0 0.0
  %1017 = vmatpush1.msra.mxu0 0.0
  %1018 = vmatprep.subr.mxu0 0.0
  %1019 = vmatpush1.msra.mxu0 0.0
  %1020 = vmatprep.subr.mxu0 0.0
  %1021 = vmatpush1.msra.mxu0 0.0
  %1022 = vmatprep.subr.mxu0 0.0
  %1023 = vmatpush1.msra.mxu0 0.0
  %1024 = vmatprep.subr.mxu0 0.0
  %1025 = vmatpush1.msra.mxu0 0.0
  %1026 = vmatprep.subr.mxu0 0.0
  %1027 = vmatpush1.msra.mxu0 0.0
  %1028 = vmatprep.subr.mxu0 0.0
  %1029 = vmatpush1.msra.mxu0 0.0
  %1030 = vmatprep.subr.mxu0 0.0
  %1031 = vmatpush1.msra.mxu0 0.0
  %1032 = vmatprep.subr.mxu0 0.0
  %1033 = vmatpush1.msra.mxu0 0.0
  %1034 = vmatprep.subr.mxu0 0.0
  %1035 = vmatpush1.msra.mxu0 0.0
  %1036 = vmatprep.subr.mxu0 0.0
  %1037 = vmatpush1.msra.mxu0 0.0
  %1038 = vmatprep.subr.mxu0 0.0
  %1039 = vmatpush1.msra.mxu0 0.0
  %1040 = vmatprep.subr.mxu0 0.0
  %1041 = vmatpush1.msra.mxu0 0.0
  %1042 = vmatprep.subr.mxu0 0.0
  %1043 = vmatpush1.msra.mxu0 0.0
  %1044 = vmatprep.subr.mxu0 0.0
  %1045 = vmatpush1.msra.mxu0 0.0
  %1046 = vmatprep.subr.mxu0 0.0
  %1047 = vmatpush1.msra.mxu0 0.0
  %1048 = vmatprep.subr.mxu0 0.0
  %1049 = vmatpush1.msra.mxu0 0.0
  %1050 = vmatprep.subr.mxu0 0.0
  %1051 = vmatpush1.msra.mxu0 0.0
  %1052 = vmatprep.subr.mxu0 0.0
  %1053 = vmatpush1.msra.mxu0 0.0
  %1054 = vmatprep.subr.mxu0 0.0
  %1055 = vmatpush1.msra.mxu0 0.0
  %1056 = vmatprep.subr.mxu0 0.0
  %1057 = vmatpush1.msra.mxu0 0.0
  %1058 = vmatprep.mubr.f32.mxu0 0.0
  %1059 = vmatmul.mubr.f32.gmra.mrb[0].mxu0 %v989
  %v1060 = vpop.f32.mrb[0].mxu0
  %v1061 = vadd.f32 0.0, %v1060
  %v1062 = vpop.f32.mrb[0].mxu0
  %1063 = vdwg.mxu0
  %1065 = vrot.lane.b32.xlu0 %v983, 97
  %v1066 = vpop.permute.xlu0 %1065
  %v1068 = vsel %vm410, %v985, 0
  %v1070 = vsel %vm414, %v1066, 0
  %1072 = vmatprep.subr.mxu0 0.0
  %1073 = vmatpush1.msra.mxu0 %v1070
  %1074 = vmatprep.subr.mxu0 0.0
  %1075 = vmatpush1.msra.mxu0 0.0
  %1076 = vmatprep.subr.mxu0 0.0
  %1077 = vmatpush1.msra.mxu0 0.0
  %1078 = vmatprep.subr.mxu0 0.0
  %1079 = vmatpush1.msra.mxu0 0.0
  %1080 = vmatprep.subr.mxu0 0.0
  %1081 = vmatpush1.msra.mxu0 0.0
  %1082 = vmatprep.subr.mxu0 0.0
  %1083 = vmatpush1.msra.mxu0 0.0
  %1084 = vmatprep.subr.mxu0 0.0
  %1085 = vmatpush1.msra.mxu0 0.0
  %1086 = vmatprep.subr.mxu0 0.0
  %1087 = vmatpush1.msra.mxu0 0.0
  %1088 = vmatprep.subr.mxu0 0.0
  %1089 = vmatpush1.msra.mxu0 0.0
  %1090 = vmatprep.subr.mxu0 0.0
  %1091 = vmatpush1.msra.mxu0 0.0
  %1092 = vmatprep.subr.mxu0 0.0
  %1093 = vmatpush1.msra.mxu0 0.0
  %1094 = vmatprep.subr.mxu0 0.0
  %1095 = vmatpush1.msra.mxu0 0.0
  %1096 = vmatprep.subr.mxu0 0.0
  %1097 = vmatpush1.msra.mxu0 0.0
  %1098 = vmatprep.subr.mxu0 0.0
  %1099 = vmatpush1.msra.mxu0 0.0
  %1100 = vmatprep.subr.mxu0 0.0
  %1101 = vmatpush1.msra.mxu0 0.0
  %1102 = vmatprep.subr.mxu0 0.0
  %1103 = vmatpush1.msra.mxu0 0.0
  %1104 = vmatprep.subr.mxu0 0.0
  %1105 = vmatpush1.msra.mxu0 0.0
  %1106 = vmatprep.subr.mxu0 0.0
  %1107 = vmatpush1.msra.mxu0 0.0
  %1108 = vmatprep.subr.mxu0 0.0
  %1109 = vmatpush1.msra.mxu0 0.0
  %1110 = vmatprep.subr.mxu0 0.0
  %1111 = vmatpush1.msra.mxu0 0.0
  %1112 = vmatprep.subr.mxu0 0.0
  %1113 = vmatpush1.msra.mxu0 0.0
  %1114 = vmatprep.subr.mxu0 0.0
  %1115 = vmatpush1.msra.mxu0 0.0
  %1116 = vmatprep.subr.mxu0 0.0
  %1117 = vmatpush1.msra.mxu0 0.0
  %1118 = vmatprep.subr.mxu0 0.0
  %1119 = vmatpush1.msra.mxu0 0.0
  %1120 = vmatprep.subr.mxu0 0.0
  %1121 = vmatpush1.msra.mxu0 0.0
  %1122 = vmatprep.subr.mxu0 0.0
  %1123 = vmatpush1.msra.mxu0 0.0
  %1124 = vmatprep.subr.mxu0 0.0
  %1125 = vmatpush1.msra.mxu0 0.0
  %1126 = vmatprep.subr.mxu0 0.0
  %1127 = vmatpush1.msra.mxu0 0.0
  %1128 = vmatprep.subr.mxu0 0.0
  %1129 = vmatpush1.msra.mxu0 0.0
  %1130 = vmatprep.subr.mxu0 0.0
  %1131 = vmatpush1.msra.mxu0 0.0
  %1132 = vmatprep.subr.mxu0 0.0
  %1133 = vmatpush1.msra.mxu0 0.0
  %1134 = vmatprep.subr.mxu0 0.0
  %1135 = vmatpush1.msra.mxu0 0.0
  %1136 = vmatprep.mubr.f32.mxu0 0.0
  %1137 = vmatmul.mubr.f32.gmra.mrb[0].mxu0 %v1068
  %v1138 = vpop.f32.mrb[0].mxu0
  %v1139 = vadd.f32 %v1061, %v1138
  %v1140 = vpop.f32.mrb[0].mxu0
  %1141 = vdwg.mxu0
  %s1142 = scalar_lea.vmem %s7, 16
  %v1143 = vld [vmem:[%s1142] sm:$0xff]
  %1145 = vrot.lane.b32.xlu0 %v984, 127
  %v1146 = vpop.permute.xlu0 %1145
  %v1148 = vsel %vm410, %v1143, 0
  %v1150 = vsel %vm414, %v1146, 0
  %1152 = vmatprep.subr.mxu0 0.0
  %1153 = vmatpush1.msra.mxu0 %v1150
  %1154 = vmatprep.subr.mxu0 0.0
  %1155 = vmatpush1.msra.mxu0 0.0
  %1156 = vmatprep.subr.mxu0 0.0
  %1157 = vmatpush1.msra.mxu0 0.0
  %1158 = vmatprep.subr.mxu0 0.0
  %1159 = vmatpush1.msra.mxu0 0.0
  %1160 = vmatprep.subr.mxu0 0.0
  %1161 = vmatpush1.msra.mxu0 0.0
  %1162 = vmatprep.subr.mxu0 0.0
  %1163 = vmatpush1.msra.mxu0 0.0
  %1164 = vmatprep.subr.mxu0 0.0
  %1165 = vmatpush1.msra.mxu0 0.0
  %1166 = vmatprep.subr.mxu0 0.0
  %1167 = vmatpush1.msra.mxu0 0.0
  %1168 = vmatprep.subr.mxu0 0.0
  %1169 = vmatpush1.msra.mxu0 0.0
  %1170 = vmatprep.subr.mxu0 0.0
  %1171 = vmatpush1.msra.mxu0 0.0
  %1172 = vmatprep.subr.mxu0 0.0
  %1173 = vmatpush1.msra.mxu0 0.0
  %1174 = vmatprep.subr.mxu0 0.0
  %1175 = vmatpush1.msra.mxu0 0.0
  %1176 = vmatprep.subr.mxu0 0.0
  %1177 = vmatpush1.msra.mxu0 0.0
  %1178 = vmatprep.subr.mxu0 0.0
  %1179 = vmatpush1.msra.mxu0 0.0
  %1180 = vmatprep.subr.mxu0 0.0
  %1181 = vmatpush1.msra.mxu0 0.0
  %1182 = vmatprep.subr.mxu0 0.0
  %1183 = vmatpush1.msra.mxu0 0.0
  %1184 = vmatprep.subr.mxu0 0.0
  %1185 = vmatpush1.msra.mxu0 0.0
  %1186 = vmatprep.subr.mxu0 0.0
  %1187 = vmatpush1.msra.mxu0 0.0
  %1188 = vmatprep.subr.mxu0 0.0
  %1189 = vmatpush1.msra.mxu0 0.0
  %1190 = vmatprep.subr.mxu0 0.0
  %1191 = vmatpush1.msra.mxu0 0.0
  %1192 = vmatprep.subr.mxu0 0.0
  %1193 = vmatpush1.msra.mxu0 0.0
  %1194 = vmatprep.subr.mxu0 0.0
  %1195 = vmatpush1.msra.mxu0 0.0
  %1196 = vmatprep.subr.mxu0 0.0
  %1197 = vmatpush1.msra.mxu0 0.0
  %1198 = vmatprep.subr.mxu0 0.0
  %1199 = vmatpush1.msra.mxu0 0.0
  %1200 = vmatprep.subr.mxu0 0.0
  %1201 = vmatpush1.msra.mxu0 0.0
  %1202 = vmatprep.subr.mxu0 0.0
  %1203 = vmatpush1.msra.mxu0 0.0
  %1204 = vmatprep.subr.mxu0 0.0
  %1205 = vmatpush1.msra.mxu0 0.0
  %1206 = vmatprep.subr.mxu0 0.0
  %1207 = vmatpush1.msra.mxu0 0.0
  %1208 = vmatprep.subr.mxu0 0.0
  %1209 = vmatpush1.msra.mxu0 0.0
  %1210 = vmatprep.subr.mxu0 0.0
  %1211 = vmatpush1.msra.mxu0 0.0
  %1212 = vmatprep.subr.mxu0 0.0
  %1213 = vmatpush1.msra.mxu0 0.0
  %1214 = vmatprep.subr.mxu0 0.0
  %1215 = vmatpush1.msra.mxu0 0.0
  %1216 = vmatprep.mubr.f32.mxu0 0.0
  %1217 = vmatmul.mubr.f32.gmra.mrb[0].mxu0 %v1148
  %v1218 = vpop.f32.mrb[0].mxu0
  %v1219 = vadd.f32 0.0, %v1218
  %v1220 = vpop.f32.mrb[0].mxu0
  %1221 = vdwg.mxu0
  %v1222 = vadd.f32 %v1139, %v1219
  %1224 = vset.pattern.permute.xlu0 0
  %1225 = vperm.xlu0 %1224, %v976
  %v1226 = vpop.permute.xlu0 %1225
  %v1228 = vadd.f32 %v1222, %v1226
  %v1229 = vld [vmem:[%s13] sm:$0xff]
  %v1230 = vld [vmem:[%s13 + $0x8] sm:$0xff]
  %v1231 = vld [vmem:[%s13 + $0x10] sm:$0xff]
  %v1232 = vld [vmem:[%s13 + $0x18] sm:$0xff]
  %v1234 = vsel %vm65, %v1228, 0
  %1236 = vmatprep.subr.mxu0 0.0
  %1237 = vmatpush1.msra.mxu0 %v1229
  %1238 = vmatprep.subr.mxu0 0.0
  %1239 = vmatpush1.msra.mxu0 %v1230
  %1240 = vmatprep.subr.mxu0 0.0
  %1241 = vmatpush1.msra.mxu0 %v1231
  %1242 = vmatprep.subr.mxu0 0.0
  %1243 = vmatpush1.msra.mxu0 %v1232
  %1244 = vmatprep.subr.mxu0 0.0
  %1245 = vmatpush1.msra.mxu0 0.0
  %1246 = vmatprep.subr.mxu0 0.0
  %1247 = vmatpush1.msra.mxu0 0.0
  %1248 = vmatprep.subr.mxu0 0.0
  %1249 = vmatpush1.msra.mxu0 0.0
  %1250 = vmatprep.subr.mxu0 0.0
  %1251 = vmatpush1.msra.mxu0 0.0
  %1252 = vmatprep.subr.mxu0 0.0
  %1253 = vmatpush1.msra.mxu0 0.0
  %1254 = vmatprep.subr.mxu0 0.0
  %1255 = vmatpush1.msra.mxu0 0.0
  %1256 = vmatprep.subr.mxu0 0.0
  %1257 = vmatpush1.msra.mxu0 0.0
  %1258 = vmatprep.subr.mxu0 0.0
  %1259 = vmatpush1.msra.mxu0 0.0
  %1260 = vmatprep.subr.mxu0 0.0
  %1261 = vmatpush1.msra.mxu0 0.0
  %1262 = vmatprep.subr.mxu0 0.0
  %1263 = vmatpush1.msra.mxu0 0.0
  %1264 = vmatprep.subr.mxu0 0.0
  %1265 = vmatpush1.msra.mxu0 0.0
  %1266 = vmatprep.subr.mxu0 0.0
  %1267 = vmatpush1.msra.mxu0 0.0
  %1268 = vmatprep.subr.mxu0 0.0
  %1269 = vmatpush1.msra.mxu0 0.0
  %1270 = vmatprep.subr.mxu0 0.0
  %1271 = vmatpush1.msra.mxu0 0.0
  %1272 = vmatprep.subr.mxu0 0.0
  %1273 = vmatpush1.msra.mxu0 0.0
  %1274 = vmatprep.subr.mxu0 0.0
  %1275 = vmatpush1.msra.mxu0 0.0
  %1276 = vmatprep.subr.mxu0 0.0
  %1277 = vmatpush1.msra.mxu0 0.0
  %1278 = vmatprep.subr.mxu0 0.0
  %1279 = vmatpush1.msra.mxu0 0.0
  %1280 = vmatprep.subr.mxu0 0.0
  %1281 = vmatpush1.msra.mxu0 0.0
  %1282 = vmatprep.subr.mxu0 0.0
  %1283 = vmatpush1.msra.mxu0 0.0
  %1284 = vmatprep.subr.mxu0 0.0
  %1285 = vmatpush1.msra.mxu0 0.0
  %1286 = vmatprep.subr.mxu0 0.0
  %1287 = vmatpush1.msra.mxu0 0.0
  %1288 = vmatprep.subr.mxu0 0.0
  %1289 = vmatpush1.msra.mxu0 0.0
  %1290 = vmatprep.subr.mxu0 0.0
  %1291 = vmatpush1.msra.mxu0 0.0
  %1292 = vmatprep.subr.mxu0 0.0
  %1293 = vmatpush1.msra.mxu0 0.0
  %1294 = vmatprep.subr.mxu0 0.0
  %1295 = vmatpush1.msra.mxu0 0.0
  %1296 = vmatprep.subr.mxu0 0.0
  %1297 = vmatpush1.msra.mxu0 0.0
  %1298 = vmatprep.subr.mxu0 0.0
  %1299 = vmatpush1.msra.mxu0 0.0
  %1300 = vmatprep.mubr.f32.mxu0 0.0
  %1301 = vmatmul.mubr.f32.gmra.mrb[0].mxu0 %v1234
  %v1302 = vpop.f32.mrb[0].mxu0
  %v1303 = vadd.f32 0.0, %v1302
  %v1304 = vpop.f32.mrb[0].mxu0
  %1305 = vdwg.mxu0
  %vm1306 = vcmask 130048
  %1307 = vst.msk [vmem:[%s14] sm:$0xff] %vm1306, %v1303
  // Predicated region
  $region58: #{enc_res_block_1d.1} parent=0 // pred_check
    _
  $region59: #{enc_res_block_1d.1} parent=0 // pred_check_branch
    %1309 = sbr.rel (0) target = $region61
  $region60: #{enc_res_block_1d.1} parent=0 // pred_region
    _
  $region61: #{enc_res_block_1d.1} parent=0 // pred_fallthru
    _
  // Predicated region
  $region62: #{enc_res_block_1d.1} parent=0 // pred_check
    _
  $region63: #{enc_res_block_1d.1} parent=0 // pred_check_branch
    %1311 = sbr.rel (0) target = $region65
  $region64: #{enc_res_block_1d.1} parent=0 // pred_region
    _
  $region65: #{enc_res_block_1d.1} parent=0 // pred_fallthru
    _

</llo_original>
